<compile_context>
chip_gen: v6e
topology: v6e:2x2x1
jax: 0.10.0
libtpu: 0.0.40
codegen_flags: <defaults>
</compile_context>

<pallas_src>
import numpy as np

import jax
import jax.numpy as jnp
from jax.experimental import pallas as pl
from jax.experimental.pallas import tpu as pltpu

EPS = 1e-5          # PyTorch GroupNorm default eps
NUM_GROUPS = 2      # GroupNorm(2, planes)


# ----------------------------- kernel helpers -------------------------------

def _conv3x3_banded(h3, b_ref, NB, H, WC):
    """3x3 'same' conv, lane-dense.

    h3:    (NB, H, W*C) float32 activations (lane index = x*C + ci).
    b_ref: (3, W*C, W*C) ref of banded block-Toeplitz weights; b_ref[ky] maps
           an input row to that row's contribution for kernel row ky, with the
           x zero-padding encoded in the band structure.
    Returns (NB, H, W*C) float32: out[y] = c0[y-1] + c1[y] + c2[y+1].
    """
    lhs = h3.reshape(NB * H, WC).astype(b_ref.dtype)
    c0 = jnp.dot(lhs, b_ref[0], preferred_element_type=jnp.float32).reshape(NB, H, WC)
    c1 = jnp.dot(lhs, b_ref[1], preferred_element_type=jnp.float32).reshape(NB, H, WC)
    c2 = jnp.dot(lhs, b_ref[2], preferred_element_type=jnp.float32).reshape(NB, H, WC)
    zrow = jnp.zeros((NB, 1, WC), jnp.float32)
    up = jnp.concatenate([zrow, c0[:, :H - 1, :]], axis=1)   # row y gets c0[y-1]
    dn = jnp.concatenate([c2[:, 1:, :], zrow], axis=1)       # row y gets c2[y+1]
    return up + c1 + dn


def _group_norm_dense(h3, gamma_ref, beta_ref, p_ref):
    """Fused single-pass GroupNorm (PyTorch semantics), lane-dense & batched.

    h3:        (NB, H, W*C) float32.
    gamma_ref: (1, W*C) gamma tiled across x (wrapper-side).
    beta_ref:  (1, W*C) beta  tiled across x.
    p_ref:     (W*C, W*C) group-averaging matrix: P[l', l] = 1/count if
               channel(l') and channel(l) are in the same group, else 0.
    """
    s1 = jnp.sum(h3, axis=1)                                   # (NB, W*C)
    s2 = jnp.sum(h3 * h3, axis=1)                              # (NB, W*C)
    mean = jnp.dot(s1, p_ref[...], preferred_element_type=jnp.float32)   # E[x]
    ex2 = jnp.dot(s2, p_ref[...], preferred_element_type=jnp.float32)    # E[x^2]
    var = jnp.maximum(ex2 - mean * mean, 0.0)                  # clamp cancellation
    inv = jax.lax.rsqrt(var + EPS)                             # (NB, W*C)
    scale = gamma_ref[...].astype(jnp.float32) * inv           # (NB, W*C)
    shift = beta_ref[...].astype(jnp.float32) - mean * scale
    return h3 * scale[:, None, :] + shift[:, None, :]


# --------------------------------- kernel -----------------------------------

def basic_block_kernel(x_ref, b1_ref, b2_ref, g1_ref, be1_ref, g2_ref, be2_ref,
                       p_ref, o_ref):
    # x_ref / o_ref: (NB, H, W*C) lane-dense input/output blocks.
    NB, H, WC = x_ref.shape
    x = x_ref[...].astype(jnp.float32)

    # conv1 -> GN1 -> ReLU
    h1 = _conv3x3_banded(x, b1_ref, NB, H, WC)
    h1 = jnp.maximum(_group_norm_dense(h1, g1_ref, be1_ref, p_ref), 0.0)

    # conv2 -> GN2 (no staging scratch: h1 is consumed lane-dense in place)
    h2 = _conv3x3_banded(h1, b2_ref, NB, H, WC)
    h2 = _group_norm_dense(h2, g2_ref, be2_ref, p_ref)

    # identity shortcut + ReLU, lane-dense unmasked store
    o_ref[...] = jnp.maximum(h2 + x, 0.0).astype(o_ref.dtype)


# -------------------------------- wrapper ------------------------------------

def _band_weights(w_hwio, W):
    """HWIO (3,3,Cin,Cout) -> (3, W*Cin, W*Cout) banded block-Toeplitz weights.

    B[ky, x_in*Cin+ci, x_out*Cout+co] = w[ky, kx, ci, co] with kx = x_in-x_out+1
    when 0 <= kx <= 2, else 0 (this encodes the 'same' padding along x).
    """
    KH, KW, Cin, Cout = w_hwio.shape
    sel = np.zeros((KW, W, W), np.float32)
    for kx in range(KW):
        for x_in in range(W):
            x_out = x_in - (kx - 1)
            if 0 <= x_out < W:
                sel[kx, x_in, x_out] = 1.0
    B = jnp.einsum("kpq,ykij->ypiqj", jnp.asarray(sel), w_hwio)
    return B.reshape(KH, W * Cin, W * Cout)


def basic_block_pallas(x_nhwc, w1, g1, b1, w2, g2, b2, *, images_per_block=1):
    """x_nhwc: (N, H, W, C). w1/w2: HWIO (3, 3, C, C). g*/b*: (1, C)."""
    N, H, W, C = x_nhwc.shape
    NB = images_per_block
    assert N % NB == 0, "batch must be divisible by images_per_block"
    assert C % NUM_GROUPS == 0
    # Identity-shortcut BasicBlock only (stride=1, in_planes == planes).
    assert w1.shape == (3, 3, C, C) and w2.shape == (3, 3, C, C), \
        "downsampling shortcut (stride!=1 / in_planes!=planes) not supported"

    WC = W * C
    # bf16 matmul operands only at production channel counts; f32 accumulation
    # always (preferred_element_type).  At C=8 the kernel is layout-bound.
    mm_dtype = jnp.bfloat16 if C >= 64 else jnp.float32

    # Lane-dense views / constants prepared wrapper-side (hidden by pipeline).
    x_dense = x_nhwc.reshape(N, H, WC)
    B1 = _band_weights(w1, W).astype(mm_dtype)       # (3, WC, WC)
    B2 = _band_weights(w2, W).astype(mm_dtype)
    g1d = jnp.tile(g1.reshape(1, C).astype(jnp.float32), (1, W))   # (1, WC)
    b1d = jnp.tile(b1.reshape(1, C).astype(jnp.float32), (1, W))
    g2d = jnp.tile(g2.reshape(1, C).astype(jnp.float32), (1, W))
    b2d = jnp.tile(b2.reshape(1, C).astype(jnp.float32), (1, W))

    cg = C // NUM_GROUPS
    lane_grp = (np.arange(WC) % C) // cg
    P = jnp.asarray((lane_grp[:, None] == lane_grp[None, :]).astype(np.float32)
                    / float(H * W * cg))                           # (WC, WC)

    # Grid: one step per NB images; >=2 even "parallel" steps shard across
    # the two v7x TensorCores (N=2, NB=1 -> grid=2).
    out_dense = pl.pallas_call(
        basic_block_kernel,
        out_shape=jax.ShapeDtypeStruct((N, H, WC), x_nhwc.dtype),
        grid_spec=pltpu.PrefetchScalarGridSpec(
            num_scalar_prefetch=0,
            grid=(N // NB,),
            in_specs=[
                pl.BlockSpec((NB, H, WC), lambda n: (n, 0, 0)),    # x (lane-dense)
                pl.BlockSpec((3, WC, WC), lambda n: (0, 0, 0)),    # conv1 banded W
                pl.BlockSpec((3, WC, WC), lambda n: (0, 0, 0)),    # conv2 banded W
                pl.BlockSpec((1, WC), lambda n: (0, 0)),           # gn1 gamma
                pl.BlockSpec((1, WC), lambda n: (0, 0)),           # gn1 beta
                pl.BlockSpec((1, WC), lambda n: (0, 0)),           # gn2 gamma
                pl.BlockSpec((1, WC), lambda n: (0, 0)),           # gn2 beta
                pl.BlockSpec((WC, WC), lambda n: (0, 0)),          # group-avg P
            ],
            out_specs=pl.BlockSpec((NB, H, WC), lambda n: (n, 0, 0)),
        ),
        compiler_params=pltpu.CompilerParams(
            dimension_semantics=("parallel",),
            vmem_limit_bytes=32 * 1024 * 1024),
    )(x_dense, B1, B2, g1d, b1d, g2d, b2d, P)

    return out_dense.reshape(N, H, W, C)


# --------------------------- pure-JAX reference ------------------------------

def ref_forward(x_nhwc, w1, g1, b1, w2, g2, b2):
    def conv(x, w):
        return jax.lax.conv_general_dilated(
            x, w, window_strides=(1, 1), padding="SAME",
            dimension_numbers=("NHWC", "HWIO", "NHWC"))

    def gn(x, gamma, beta):
        N, H, W, C = x.shape
        cg = C // NUM_GROUPS
        xg = x.reshape(N, H, W, NUM_GROUPS, cg)
        mean = xg.mean(axis=(1, 2, 4), keepdims=True)
        var = ((xg - mean) ** 2).mean(axis=(1, 2, 4), keepdims=True)
        xn = ((xg - mean) / jnp.sqrt(var + EPS)).reshape(N, H, W, C)
        return xn * gamma.reshape(1, 1, 1, C) + beta.reshape(1, 1, 1, C)

    out = jax.nn.relu(gn(conv(x_nhwc, w1), g1, b1))
    out = gn(conv(out, w2), g2, b2)
    return jax.nn.relu(out + x_nhwc)


# ----------------------------------- main ------------------------------------

if __name__ == "__main__":
    N, C, H, W = 2, 8, 16, 16      # in_planes = planes = 8, stride = 1; W*C = 128
    ks = jax.random.split(jax.random.PRNGKey(0), 7)

    x_nchw = jax.random.normal(ks[0], (N, C, H, W), jnp.float32)     # PyTorch NCHW
    w1 = 0.1 * jax.random.normal(ks[1], (3, 3, C, C), jnp.float32)   # HWIO
    g1 = 1.0 + 0.1 * jax.random.normal(ks[2], (1, C), jnp.float32)
    b1 = 0.1 * jax.random.normal(ks[3], (1, C), jnp.float32)
    w2 = 0.1 * jax.random.normal(ks[4], (3, 3, C, C), jnp.float32)   # HWIO
    g2 = 1.0 + 0.1 * jax.random.normal(ks[5], (1, C), jnp.float32)
    b2 = 0.1 * jax.random.normal(ks[6], (1, C), jnp.float32)

    # NCHW -> NHWC for the kernel, NHWC -> NCHW on the way out.
    x_nhwc = jnp.transpose(x_nchw, (0, 2, 3, 1))
    out_nhwc = basic_block_pallas(x_nhwc, w1, g1, b1, w2, g2, b2,
                                  images_per_block=1)
    out_nchw = jnp.transpose(out_nhwc, (0, 3, 1, 2))
    jax.block_until_ready(out_nchw)

    ref_nchw = jnp.transpose(ref_forward(x_nhwc, w1, g1, b1, w2, g2, b2),
                             (0, 3, 1, 2))
    max_err = float(jnp.max(jnp.abs(out_nchw - ref_nchw)))
    assert jnp.allclose(out_nchw, ref_nchw, atol=2e-3, rtol=2e-3), max_err

    print("KERNEL_OK")
</pallas_src>

<mosaic_0001>
module attributes {stable_mosaic.version = 11 : i64} {
  func.func @basic_block_kernel(%arg0: i32, %arg1: memref<1x16x128xf32, #tpu.memory_space<vmem>>, %arg2: memref<3x128x128xf32, #tpu.memory_space<vmem>>, %arg3: memref<3x128x128xf32, #tpu.memory_space<vmem>>, %arg4: memref<1x128xf32, #tpu.memory_space<vmem>>, %arg5: memref<1x128xf32, #tpu.memory_space<vmem>>, %arg6: memref<1x128xf32, #tpu.memory_space<vmem>>, %arg7: memref<1x128xf32, #tpu.memory_space<vmem>>, %arg8: memref<128x128xf32, #tpu.memory_space<vmem>>, %arg9: memref<1x16x128xf32, #tpu.memory_space<vmem>>) attributes {dimension_semantics = [#tpu.dimension_semantics<parallel>], iteration_bounds = array<i64: 2>, scalar_prefetch = 0 : i64, scratch_operands = 0 : i64, tpu.core_type = #tpu.core_type<tc>, window_params = [{transform_indices = @transform_0, window_bounds = array<i64: 1, 16, 128>}, {pipeline_mode = #tpu.pipeline_mode<synchronous>, transform_indices = @transform_1, window_bounds = array<i64: 3, 128, 128>}, {pipeline_mode = #tpu.pipeline_mode<synchronous>, transform_indices = @transform_2, window_bounds = array<i64: 3, 128, 128>}, {pipeline_mode = #tpu.pipeline_mode<synchronous>, transform_indices = @transform_3, window_bounds = array<i64: 1, 128>}, {pipeline_mode = #tpu.pipeline_mode<synchronous>, transform_indices = @transform_4, window_bounds = array<i64: 1, 128>}, {pipeline_mode = #tpu.pipeline_mode<synchronous>, transform_indices = @transform_5, window_bounds = array<i64: 1, 128>}, {pipeline_mode = #tpu.pipeline_mode<synchronous>, transform_indices = @transform_6, window_bounds = array<i64: 1, 128>}, {pipeline_mode = #tpu.pipeline_mode<synchronous>, transform_indices = @transform_7, window_bounds = array<i64: 128, 128>}, {transform_indices = @transform_8, window_bounds = array<i64: 1, 16, 128>}]} {
    %c0 = arith.constant 0 : index
    %c0_0 = arith.constant 0 : index
    %c0_1 = arith.constant 0 : index
    %0 = vector.load %arg1[%c0, %c0_0, %c0_1] : memref<1x16x128xf32, #tpu.memory_space<vmem>>, vector<1x16x128xf32>
    %1 = vector.shape_cast %0 : vector<1x16x128xf32> to vector<16x128xf32>
    %c0_2 = arith.constant 0 : index
    %c0_3 = arith.constant 0 : index
    %c0_4 = arith.constant 0 : index
    %2 = vector.load %arg2[%c0_2, %c0_3, %c0_4] : memref<3x128x128xf32, #tpu.memory_space<vmem>>, vector<1x128x128xf32>
    %3 = vector.shape_cast %2 : vector<1x128x128xf32> to vector<128x128xf32>
    %cst = arith.constant dense<0.000000e+00> : vector<16x128xf32>
    %4 = tpu.matmul %1, %3, %cst {dimension_numbers = #tpu.dot_dimension_numbers<[1], [0], [0], [1], [0, 0, 1, 1], [], []>} : vector<16x128xf32>, vector<128x128xf32>, vector<16x128xf32> -> vector<16x128xf32>
    %5 = vector.shape_cast %4 : vector<16x128xf32> to vector<1x16x128xf32>
    %c1 = arith.constant 1 : index
    %c0_5 = arith.constant 0 : index
    %c0_6 = arith.constant 0 : index
    %6 = vector.load %arg2[%c1, %c0_5, %c0_6] : memref<3x128x128xf32, #tpu.memory_space<vmem>>, vector<1x128x128xf32>
    %7 = vector.shape_cast %6 : vector<1x128x128xf32> to vector<128x128xf32>
    %cst_7 = arith.constant dense<0.000000e+00> : vector<16x128xf32>
    %8 = tpu.matmul %1, %7, %cst_7 {dimension_numbers = #tpu.dot_dimension_numbers<[1], [0], [0], [1], [0, 0, 1, 1], [], []>} : vector<16x128xf32>, vector<128x128xf32>, vector<16x128xf32> -> vector<16x128xf32>
    %9 = vector.shape_cast %8 : vector<16x128xf32> to vector<1x16x128xf32>
    %c2 = arith.constant 2 : index
    %c0_8 = arith.constant 0 : index
    %c0_9 = arith.constant 0 : index
    %10 = vector.load %arg2[%c2, %c0_8, %c0_9] : memref<3x128x128xf32, #tpu.memory_space<vmem>>, vector<1x128x128xf32>
    %11 = vector.shape_cast %10 : vector<1x128x128xf32> to vector<128x128xf32>
    %cst_10 = arith.constant dense<0.000000e+00> : vector<16x128xf32>
    %12 = tpu.matmul %1, %11, %cst_10 {dimension_numbers = #tpu.dot_dimension_numbers<[1], [0], [0], [1], [0, 0, 1, 1], [], []>} : vector<16x128xf32>, vector<128x128xf32>, vector<16x128xf32> -> vector<16x128xf32>
    %13 = vector.shape_cast %12 : vector<16x128xf32> to vector<1x16x128xf32>
    %cst_11 = arith.constant 0.000000e+00 : f32
    %14 = vector.broadcast %cst_11 : f32 to vector<1x1x128xf32>
    %15 = vector.extract_strided_slice %5 {offsets = [0, 0, 0], sizes = [1, 15, 128], strides = [1, 1, 1]} : vector<1x16x128xf32> to vector<1x15x128xf32>
    %16 = tpu.concatenate %14, %15 in 1 : vector<1x1x128xf32>, vector<1x15x128xf32> -> vector<1x16x128xf32>
    %17 = vector.extract_strided_slice %13 {offsets = [0, 1, 0], sizes = [1, 15, 128], strides = [1, 1, 1]} : vector<1x16x128xf32> to vector<1x15x128xf32>
    %18 = tpu.concatenate %17, %14 in 1 : vector<1x15x128xf32>, vector<1x1x128xf32> -> vector<1x16x128xf32>
    %19 = arith.addf %16, %9 : vector<1x16x128xf32>
    %20 = arith.addf %19, %18 : vector<1x16x128xf32>
    %cst_12 = arith.constant dense<0.000000e+00> : vector<1x128xf32>
    %21 = vector.multi_reduction <add>, %20, %cst_12 [1] : vector<1x16x128xf32> to vector<1x128xf32>
    %22 = arith.mulf %20, %20 : vector<1x16x128xf32>
    %cst_13 = arith.constant dense<0.000000e+00> : vector<1x128xf32>
    %23 = vector.multi_reduction <add>, %22, %cst_13 [1] : vector<1x16x128xf32> to vector<1x128xf32>
    %c0_14 = arith.constant 0 : index
    %c0_15 = arith.constant 0 : index
    %24 = vector.load %arg8[%c0_14, %c0_15] : memref<128x128xf32, #tpu.memory_space<vmem>>, vector<128x128xf32>
    %cst_16 = arith.constant dense<0.000000e+00> : vector<1x128xf32>
    %25 = tpu.matmul %21, %24, %cst_16 {dimension_numbers = #tpu.dot_dimension_numbers<[1], [0], [0], [1], [0, 0, 1, 1], [], []>} : vector<1x128xf32>, vector<128x128xf32>, vector<1x128xf32> -> vector<1x128xf32>
    %c0_17 = arith.constant 0 : index
    %c0_18 = arith.constant 0 : index
    %26 = vector.load %arg8[%c0_17, %c0_18] : memref<128x128xf32, #tpu.memory_space<vmem>>, vector<128x128xf32>
    %cst_19 = arith.constant dense<0.000000e+00> : vector<1x128xf32>
    %27 = tpu.matmul %23, %26, %cst_19 {dimension_numbers = #tpu.dot_dimension_numbers<[1], [0], [0], [1], [0, 0, 1, 1], [], []>} : vector<1x128xf32>, vector<128x128xf32>, vector<1x128xf32> -> vector<1x128xf32>
    %28 = arith.mulf %25, %25 : vector<1x128xf32>
    %29 = arith.subf %27, %28 : vector<1x128xf32>
    %cst_20 = arith.constant 0.000000e+00 : f32
    %30 = vector.broadcast %cst_20 : f32 to vector<1x128xf32>
    %31 = arith.maximumf %29, %30 : vector<1x128xf32>
    %cst_21 = arith.constant 9.99999974E-6 : f32
    %32 = vector.broadcast %cst_21 : f32 to vector<1x128xf32>
    %33 = arith.addf %31, %32 : vector<1x128xf32>
    %34 = math.rsqrt %33 : vector<1x128xf32>
    %c0_22 = arith.constant 0 : index
    %c0_23 = arith.constant 0 : index
    %35 = vector.load %arg4[%c0_22, %c0_23] : memref<1x128xf32, #tpu.memory_space<vmem>>, vector<1x128xf32>
    %36 = arith.mulf %35, %34 : vector<1x128xf32>
    %c0_24 = arith.constant 0 : index
    %c0_25 = arith.constant 0 : index
    %37 = vector.load %arg5[%c0_24, %c0_25] : memref<1x128xf32, #tpu.memory_space<vmem>>, vector<1x128xf32>
    %38 = arith.mulf %25, %36 : vector<1x128xf32>
    %39 = arith.subf %37, %38 : vector<1x128xf32>
    %40 = vector.shape_cast %36 : vector<1x128xf32> to vector<1x1x128xf32>
    %41 = vector.broadcast %40 : vector<1x1x128xf32> to vector<1x16x128xf32>
    %42 = arith.mulf %20, %41 : vector<1x16x128xf32>
    %43 = vector.shape_cast %39 : vector<1x128xf32> to vector<1x1x128xf32>
    %44 = vector.broadcast %43 : vector<1x1x128xf32> to vector<1x16x128xf32>
    %45 = arith.addf %42, %44 : vector<1x16x128xf32>
    %cst_26 = arith.constant 0.000000e+00 : f32
    %46 = vector.broadcast %cst_26 : f32 to vector<1x16x128xf32>
    %47 = arith.maximumf %45, %46 : vector<1x16x128xf32>
    %48 = vector.shape_cast %47 : vector<1x16x128xf32> to vector<16x128xf32>
    %c0_27 = arith.constant 0 : index
    %c0_28 = arith.constant 0 : index
    %c0_29 = arith.constant 0 : index
    %49 = vector.load %arg3[%c0_27, %c0_28, %c0_29] : memref<3x128x128xf32, #tpu.memory_space<vmem>>, vector<1x128x128xf32>
    %50 = vector.shape_cast %49 : vector<1x128x128xf32> to vector<128x128xf32>
    %cst_30 = arith.constant dense<0.000000e+00> : vector<16x128xf32>
    %51 = tpu.matmul %48, %50, %cst_30 {dimension_numbers = #tpu.dot_dimension_numbers<[1], [0], [0], [1], [0, 0, 1, 1], [], []>} : vector<16x128xf32>, vector<128x128xf32>, vector<16x128xf32> -> vector<16x128xf32>
    %52 = vector.shape_cast %51 : vector<16x128xf32> to vector<1x16x128xf32>
    %c1_31 = arith.constant 1 : index
    %c0_32 = arith.constant 0 : index
    %c0_33 = arith.constant 0 : index
    %53 = vector.load %arg3[%c1_31, %c0_32, %c0_33] : memref<3x128x128xf32, #tpu.memory_space<vmem>>, vector<1x128x128xf32>
    %54 = vector.shape_cast %53 : vector<1x128x128xf32> to vector<128x128xf32>
    %cst_34 = arith.constant dense<0.000000e+00> : vector<16x128xf32>
    %55 = tpu.matmul %48, %54, %cst_34 {dimension_numbers = #tpu.dot_dimension_numbers<[1], [0], [0], [1], [0, 0, 1, 1], [], []>} : vector<16x128xf32>, vector<128x128xf32>, vector<16x128xf32> -> vector<16x128xf32>
    %56 = vector.shape_cast %55 : vector<16x128xf32> to vector<1x16x128xf32>
    %c2_35 = arith.constant 2 : index
    %c0_36 = arith.constant 0 : index
    %c0_37 = arith.constant 0 : index
    %57 = vector.load %arg3[%c2_35, %c0_36, %c0_37] : memref<3x128x128xf32, #tpu.memory_space<vmem>>, vector<1x128x128xf32>
    %58 = vector.shape_cast %57 : vector<1x128x128xf32> to vector<128x128xf32>
    %cst_38 = arith.constant dense<0.000000e+00> : vector<16x128xf32>
    %59 = tpu.matmul %48, %58, %cst_38 {dimension_numbers = #tpu.dot_dimension_numbers<[1], [0], [0], [1], [0, 0, 1, 1], [], []>} : vector<16x128xf32>, vector<128x128xf32>, vector<16x128xf32> -> vector<16x128xf32>
    %60 = vector.shape_cast %59 : vector<16x128xf32> to vector<1x16x128xf32>
    %cst_39 = arith.constant 0.000000e+00 : f32
    %61 = vector.broadcast %cst_39 : f32 to vector<1x1x128xf32>
    %62 = vector.extract_strided_slice %52 {offsets = [0, 0, 0], sizes = [1, 15, 128], strides = [1, 1, 1]} : vector<1x16x128xf32> to vector<1x15x128xf32>
    %63 = tpu.concatenate %61, %62 in 1 : vector<1x1x128xf32>, vector<1x15x128xf32> -> vector<1x16x128xf32>
    %64 = vector.extract_strided_slice %60 {offsets = [0, 1, 0], sizes = [1, 15, 128], strides = [1, 1, 1]} : vector<1x16x128xf32> to vector<1x15x128xf32>
    %65 = tpu.concatenate %64, %61 in 1 : vector<1x15x128xf32>, vector<1x1x128xf32> -> vector<1x16x128xf32>
    %66 = arith.addf %63, %56 : vector<1x16x128xf32>
    %67 = arith.addf %66, %65 : vector<1x16x128xf32>
    %cst_40 = arith.constant dense<0.000000e+00> : vector<1x128xf32>
    %68 = vector.multi_reduction <add>, %67, %cst_40 [1] : vector<1x16x128xf32> to vector<1x128xf32>
    %69 = arith.mulf %67, %67 : vector<1x16x128xf32>
    %cst_41 = arith.constant dense<0.000000e+00> : vector<1x128xf32>
    %70 = vector.multi_reduction <add>, %69, %cst_41 [1] : vector<1x16x128xf32> to vector<1x128xf32>
    %c0_42 = arith.constant 0 : index
    %c0_43 = arith.constant 0 : index
    %71 = vector.load %arg8[%c0_42, %c0_43] : memref<128x128xf32, #tpu.memory_space<vmem>>, vector<128x128xf32>
    %cst_44 = arith.constant dense<0.000000e+00> : vector<1x128xf32>
    %72 = tpu.matmul %68, %71, %cst_44 {dimension_numbers = #tpu.dot_dimension_numbers<[1], [0], [0], [1], [0, 0, 1, 1], [], []>} : vector<1x128xf32>, vector<128x128xf32>, vector<1x128xf32> -> vector<1x128xf32>
    %c0_45 = arith.constant 0 : index
    %c0_46 = arith.constant 0 : index
    %73 = vector.load %arg8[%c0_45, %c0_46] : memref<128x128xf32, #tpu.memory_space<vmem>>, vector<128x128xf32>
    %cst_47 = arith.constant dense<0.000000e+00> : vector<1x128xf32>
    %74 = tpu.matmul %70, %73, %cst_47 {dimension_numbers = #tpu.dot_dimension_numbers<[1], [0], [0], [1], [0, 0, 1, 1], [], []>} : vector<1x128xf32>, vector<128x128xf32>, vector<1x128xf32> -> vector<1x128xf32>
    %75 = arith.mulf %72, %72 : vector<1x128xf32>
    %76 = arith.subf %74, %75 : vector<1x128xf32>
    %cst_48 = arith.constant 0.000000e+00 : f32
    %77 = vector.broadcast %cst_48 : f32 to vector<1x128xf32>
    %78 = arith.maximumf %76, %77 : vector<1x128xf32>
    %cst_49 = arith.constant 9.99999974E-6 : f32
    %79 = vector.broadcast %cst_49 : f32 to vector<1x128xf32>
    %80 = arith.addf %78, %79 : vector<1x128xf32>
    %81 = math.rsqrt %80 : vector<1x128xf32>
    %c0_50 = arith.constant 0 : index
    %c0_51 = arith.constant 0 : index
    %82 = vector.load %arg6[%c0_50, %c0_51] : memref<1x128xf32, #tpu.memory_space<vmem>>, vector<1x128xf32>
    %83 = arith.mulf %82, %81 : vector<1x128xf32>
    %c0_52 = arith.constant 0 : index
    %c0_53 = arith.constant 0 : index
    %84 = vector.load %arg7[%c0_52, %c0_53] : memref<1x128xf32, #tpu.memory_space<vmem>>, vector<1x128xf32>
    %85 = arith.mulf %72, %83 : vector<1x128xf32>
    %86 = arith.subf %84, %85 : vector<1x128xf32>
    %87 = vector.shape_cast %83 : vector<1x128xf32> to vector<1x1x128xf32>
    %88 = vector.broadcast %87 : vector<1x1x128xf32> to vector<1x16x128xf32>
    %89 = arith.mulf %67, %88 : vector<1x16x128xf32>
    %90 = vector.shape_cast %86 : vector<1x128xf32> to vector<1x1x128xf32>
    %91 = vector.broadcast %90 : vector<1x1x128xf32> to vector<1x16x128xf32>
    %92 = arith.addf %89, %91 : vector<1x16x128xf32>
    %93 = arith.addf %92, %0 : vector<1x16x128xf32>
    %cst_54 = arith.constant 0.000000e+00 : f32
    %94 = vector.broadcast %cst_54 : f32 to vector<1x16x128xf32>
    %95 = arith.maximumf %93, %94 : vector<1x16x128xf32>
    %c0_55 = arith.constant 0 : index
    %c0_56 = arith.constant 0 : index
    %c0_57 = arith.constant 0 : index
    %96 = vector.load %arg9[%c0_55, %c0_56, %c0_57] : memref<1x16x128xf32, #tpu.memory_space<vmem>>, vector<1x16x128xf32>
    tpu.vector_store %arg9[%c0_55, %c0_56, %c0_57], %95 {strides = array<i32>} : memref<1x16x128xf32, #tpu.memory_space<vmem>>, vector<1x16x128xf32>,
    return
  }
  func.func @transform_0(%arg0: i32) -> (i32, i32, i32) {
    %c0_i32 = arith.constant 0 : i32
    %c0_i32_0 = arith.constant 0 : i32
    %c0_i32_1 = arith.constant 0 : i32
    return %arg0, %c0_i32, %c0_i32_0 : i32, i32, i32
  }
  func.func @transform_1(%arg0: i32) -> (i32, i32, i32) {
    %c0_i32 = arith.constant 0 : i32
    %c0_i32_0 = arith.constant 0 : i32
    %c0_i32_1 = arith.constant 0 : i32
    %c0_i32_2 = arith.constant 0 : i32
    return %c0_i32, %c0_i32_0, %c0_i32_1 : i32, i32, i32
  }
  func.func @transform_2(%arg0: i32) -> (i32, i32, i32) {
    %c0_i32 = arith.constant 0 : i32
    %c0_i32_0 = arith.constant 0 : i32
    %c0_i32_1 = arith.constant 0 : i32
    %c0_i32_2 = arith.constant 0 : i32
    return %c0_i32, %c0_i32_0, %c0_i32_1 : i32, i32, i32
  }
  func.func @transform_3(%arg0: i32) -> (i32, i32) {
    %c0_i32 = arith.constant 0 : i32
    %c0_i32_0 = arith.constant 0 : i32
    %c0_i32_1 = arith.constant 0 : i32
    return %c0_i32, %c0_i32_0 : i32, i32
  }
  func.func @transform_4(%arg0: i32) -> (i32, i32) {
    %c0_i32 = arith.constant 0 : i32
    %c0_i32_0 = arith.constant 0 : i32
    %c0_i32_1 = arith.constant 0 : i32
    return %c0_i32, %c0_i32_0 : i32, i32
  }
  func.func @transform_5(%arg0: i32) -> (i32, i32) {
    %c0_i32 = arith.constant 0 : i32
    %c0_i32_0 = arith.constant 0 : i32
    %c0_i32_1 = arith.constant 0 : i32
    return %c0_i32, %c0_i32_0 : i32, i32
  }
  func.func @transform_6(%arg0: i32) -> (i32, i32) {
    %c0_i32 = arith.constant 0 : i32
    %c0_i32_0 = arith.constant 0 : i32
    %c0_i32_1 = arith.constant 0 : i32
    return %c0_i32, %c0_i32_0 : i32, i32
  }
  func.func @transform_7(%arg0: i32) -> (i32, i32) {
    %c0_i32 = arith.constant 0 : i32
    %c0_i32_0 = arith.constant 0 : i32
    %c0_i32_1 = arith.constant 0 : i32
    return %c0_i32, %c0_i32_0 : i32, i32
  }
  func.func @transform_8(%arg0: i32) -> (i32, i32, i32) {
    %c0_i32 = arith.constant 0 : i32
    %c0_i32_0 = arith.constant 0 : i32
    %c0_i32_1 = arith.constant 0 : i32
    return %arg0, %c0_i32, %c0_i32_0 : i32, i32, i32
  }
}

</mosaic_0001>

<llo_original>
// kernel: tpu_custom_call.1
$region0: #{tpu_custom_call.1}
  #allocation0 [shape = 'u32[]', space=smem, size = 0x4, offset = 0x4, fixed_abs, tag = 'smem constant byte address 0x4 - core index']
  #allocation1 [shape = 'u32[144,128]{1,0:T(1,128)}', space=vmem, size = 0x12000, scoped, tag = 'internal scratch']
  %s0 = inlined_call_operand.hbm [shape: f32[2,16,128], index: 0, kind: input, shape index: {}]
  %s1 = inlined_call_operand.hbm [shape: f32[3,128,128], index: 1, kind: input, shape index: {}]
  %s2 = inlined_call_operand.hbm [shape: f32[3,128,128], index: 2, kind: input, shape index: {}]
  %s3 = inlined_call_operand.vmem [shape: f32[1,128], index: 3, kind: input, shape index: {}]
  %s4 = inlined_call_operand.vmem [shape: f32[1,128], index: 4, kind: input, shape index: {}]
  %s5 = inlined_call_operand.vmem [shape: f32[1,128], index: 5, kind: input, shape index: {}]
  %s6 = inlined_call_operand.vmem [shape: f32[1,128], index: 6, kind: input, shape index: {}]
  %s7 = inlined_call_operand.hbm [shape: f32[128,128], index: 7, kind: input, shape index: {}]
  %s8 = inlined_call_operand.hbm [shape: f32[2,16,128], index: 8, kind: output, shape index: {}]
  %s9 = sld [smem:[#allocation0]]
  $region81: #{tpu_custom_call.1} parent=0
    _
  %s11 = ssub.s32 1, %s9
  %s12 = scalar_select 0, %s11, %s9
  $region1: #{tpu_custom_call.1} parent=0
    #allocation2 [shape = 'u8[16384]{0}', space=vmem, size = 0x4000, scoped, tag = 'input window, operand 0']
    #allocation3 [shape = 's32[2]{0}', space=sflag, size = 0x8, scoped, tag = 'scoped memory for tpu_custom_call.1']
    #allocation4 [shape = 's32[2]{0}', space=sflag, size = 0x8, scoped, tag = 'scoped memory for tpu_custom_call.1']
    #allocation5 [shape = 'u8[196608]{0}', space=vmem, size = 0x30000, scoped, tag = 'input window, operand 1, single buffered']
    #allocation6 [shape = 's32[1]{0}', space=sflag, size = 0x4, scoped, tag = 'scoped memory for tpu_custom_call.1']
    #allocation7 [shape = 'u8[196608]{0}', space=vmem, size = 0x30000, scoped, tag = 'input window, operand 2, single buffered']
    #allocation8 [shape = 'u8[65536]{0}', space=vmem, size = 0x10000, scoped, tag = 'input window, operand 7, single buffered']
    #allocation9 [shape = 's32[1]{0}', space=sflag, size = 0x4, scoped, tag = 'scoped memory for tpu_custom_call.1']
    #allocation10 [shape = 'u8[16384]{0}', space=vmem, size = 0x4000, scoped, tag = 'output window, operand 0']
    %13 = vsyncpa [#allocation3], 0
    %s14 = scalar_lea.sflag [#allocation3], 1
    %15 = vsyncpa %s14, 0
    %16 = vsyncpa [#allocation6], 0
    %17 = vsyncpa [#allocation9], 0
    %18 = vsyncpa [#allocation4], 0
    %s19 = scalar_lea.sflag [#allocation4], 1
    %20 = vsyncpa %s19, 0
    loop: start=0, step=1, limit=4
    $region2: #{tpu_custom_call.1} parent=1 // loop_pre_header
      _
    $region3: #{tpu_custom_call.1} parent=1 // loop_header
      %s22 = sphi 0, %s26
      %p23 = scmp.ge.s32.totalorder %s22, 4
      %s32 = sphi 0, %s34
      %s35 = sphi 0, %s32
      %s36 = sphi 0, %s35
      %s52 = sphi 0, %s36
      %s56 = sphi 0, %s56
      %s58 = sphi 0, %s56
      %s59 = sphi 0, %s58
      %s73 = sphi 0, %s59
      %s77 = sphi 0, %s77
      %s79 = sphi 0, %s77
      %s80 = sphi 0, %s79
      %s94 = sphi 0, %s80
      %s98 = sphi 0, %s98
      %s100 = sphi 0, %s98
      %s101 = sphi 0, %s100
      %s115 = sphi 0, %s101
      %s119 = sphi 0, %s119
      %s121 = sphi 0, %s119
      %s122 = sphi 0, %s121
      %s136 = sphi 0, %s122
      %s140 = sphi 0, %s140
      %s142 = sphi 0, %s140
      %s143 = sphi 0, %s142
      %s157 = sphi 0, %s143
      %s161 = sphi 0, %s161
      %s163 = sphi 0, %s161
      %s164 = sphi 0, %s163
      %s178 = sphi 0, %s164
      %s182 = sphi 0, %s182
      %s184 = sphi 0, %s182
      %s185 = sphi 0, %s184
      %s199 = sphi 0, %s185
      %s205 = sphi 0, %s207
      %s208 = sphi 0, %s205
      %s209 = sphi 0, %s208
      %s225 = sphi 0, %s209
    $region4: #{tpu_custom_call.1} parent=1 // loop_header_branch
      %25 = sbr.rel (%p23) target = $region8
    $region5: #{tpu_custom_call.1} parent=1 // loop_body
      %s27 = ssub.s32 %s22, 1
      %s28 = ssub.s32 %s22, 2
      %s29 = sadd.s32 %s22, 1
      %s30 = ssub.s32 %s22, %s29
      %p31 = scmp.eq.s32.totalorder %s30, 0
      %s33 = sadd.s32 %s32, 1
      %s34 = scalar_select %p31, %s32, %s33
      %p37 = pneg %p31
      %p38 = scmp.eq.s32.totalorder %s22, 1
      %p39 = por %p37, %p38
      %p40 = scmp.ne.s32.totalorder %s32, %s35
      %p41 = scmp.eq.s32.totalorder %s22, 0
      %p42 = por %p40, %p41
      %p43 = scmp.ne.s32.totalorder %s32, %s35
      %p44 = scmp.eq.s32.totalorder %s27, 1
      %p45 = por %p43, %p44
      %p46 = scmp.ne.s32.totalorder %s35, %s36
      %p47 = scmp.eq.s32.totalorder %s27, 0
      %p48 = por %p46, %p47
      %p49 = scmp.ne.s32.totalorder %s35, %s36
      %p50 = scmp.eq.s32.totalorder %s28, 1
      %p51 = por %p49, %p50
      %p53 = scmp.ne.s32.totalorder %s36, %s52
      %p54 = scmp.eq.s32.totalorder %s28, 0
      %p55 = por %p53, %p54
      %s57 = sadd.s32 %s56, 1
      %p60 = scmp.eq.s32.totalorder %s22, 1
      %p61 = scmp.ne.s32.totalorder %s56, %s58
      %p62 = scmp.eq.s32.totalorder %s22, 0
      %p63 = por %p61, %p62
      %p64 = scmp.ne.s32.totalorder %s56, %s58
      %p65 = scmp.eq.s32.totalorder %s27, 1
      %p66 = por %p64, %p65
      %p67 = scmp.ne.s32.totalorder %s58, %s59
      %p68 = scmp.eq.s32.totalorder %s27, 0
      %p69 = por %p67, %p68
      %p70 = scmp.ne.s32.totalorder %s58, %s59
      %p71 = scmp.eq.s32.totalorder %s28, 1
      %p72 = por %p70, %p71
      %p74 = scmp.ne.s32.totalorder %s59, %s73
      %p75 = scmp.eq.s32.totalorder %s28, 0
      %p76 = por %p74, %p75
      %s78 = sadd.s32 %s77, 1
      %p81 = scmp.eq.s32.totalorder %s22, 1
      %p82 = scmp.ne.s32.totalorder %s77, %s79
      %p83 = scmp.eq.s32.totalorder %s22, 0
      %p84 = por %p82, %p83
      %p85 = scmp.ne.s32.totalorder %s77, %s79
      %p86 = scmp.eq.s32.totalorder %s27, 1
      %p87 = por %p85, %p86
      %p88 = scmp.ne.s32.totalorder %s79, %s80
      %p89 = scmp.eq.s32.totalorder %s27, 0
      %p90 = por %p88, %p89
      %p91 = scmp.ne.s32.totalorder %s79, %s80
      %p92 = scmp.eq.s32.totalorder %s28, 1
      %p93 = por %p91, %p92
      %p95 = scmp.ne.s32.totalorder %s80, %s94
      %p96 = scmp.eq.s32.totalorder %s28, 0
      %p97 = por %p95, %p96
      %s99 = sadd.s32 %s98, 1
      %p102 = scmp.eq.s32.totalorder %s22, 1
      %p103 = scmp.ne.s32.totalorder %s98, %s100
      %p104 = scmp.eq.s32.totalorder %s22, 0
      %p105 = por %p103, %p104
      %p106 = scmp.ne.s32.totalorder %s98, %s100
      %p107 = scmp.eq.s32.totalorder %s27, 1
      %p108 = por %p106, %p107
      %p109 = scmp.ne.s32.totalorder %s100, %s101
      %p110 = scmp.eq.s32.totalorder %s27, 0
      %p111 = por %p109, %p110
      %p112 = scmp.ne.s32.totalorder %s100, %s101
      %p113 = scmp.eq.s32.totalorder %s28, 1
      %p114 = por %p112, %p113
      %p116 = scmp.ne.s32.totalorder %s101, %s115
      %p117 = scmp.eq.s32.totalorder %s28, 0
      %p118 = por %p116, %p117
      %s120 = sadd.s32 %s119, 1
      %p123 = scmp.eq.s32.totalorder %s22, 1
      %p124 = scmp.ne.s32.totalorder %s119, %s121
      %p125 = scmp.eq.s32.totalorder %s22, 0
      %p126 = por %p124, %p125
      %p127 = scmp.ne.s32.totalorder %s119, %s121
      %p128 = scmp.eq.s32.totalorder %s27, 1
      %p129 = por %p127, %p128
      %p130 = scmp.ne.s32.totalorder %s121, %s122
      %p131 = scmp.eq.s32.totalorder %s27, 0
      %p132 = por %p130, %p131
      %p133 = scmp.ne.s32.totalorder %s121, %s122
      %p134 = scmp.eq.s32.totalorder %s28, 1
      %p135 = por %p133, %p134
      %p137 = scmp.ne.s32.totalorder %s122, %s136
      %p138 = scmp.eq.s32.totalorder %s28, 0
      %p139 = por %p137, %p138
      %s141 = sadd.s32 %s140, 1
      %p144 = scmp.eq.s32.totalorder %s22, 1
      %p145 = scmp.ne.s32.totalorder %s140, %s142
      %p146 = scmp.eq.s32.totalorder %s22, 0
      %p147 = por %p145, %p146
      %p148 = scmp.ne.s32.totalorder %s140, %s142
      %p149 = scmp.eq.s32.totalorder %s27, 1
      %p150 = por %p148, %p149
      %p151 = scmp.ne.s32.totalorder %s142, %s143
      %p152 = scmp.eq.s32.totalorder %s27, 0
      %p153 = por %p151, %p152
      %p154 = scmp.ne.s32.totalorder %s142, %s143
      %p155 = scmp.eq.s32.totalorder %s28, 1
      %p156 = por %p154, %p155
      %p158 = scmp.ne.s32.totalorder %s143, %s157
      %p159 = scmp.eq.s32.totalorder %s28, 0
      %p160 = por %p158, %p159
      %s162 = sadd.s32 %s161, 1
      %p165 = scmp.eq.s32.totalorder %s22, 1
      %p166 = scmp.ne.s32.totalorder %s161, %s163
      %p167 = scmp.eq.s32.totalorder %s22, 0
      %p168 = por %p166, %p167
      %p169 = scmp.ne.s32.totalorder %s161, %s163
      %p170 = scmp.eq.s32.totalorder %s27, 1
      %p171 = por %p169, %p170
      %p172 = scmp.ne.s32.totalorder %s163, %s164
      %p173 = scmp.eq.s32.totalorder %s27, 0
      %p174 = por %p172, %p173
      %p175 = scmp.ne.s32.totalorder %s163, %s164
      %p176 = scmp.eq.s32.totalorder %s28, 1
      %p177 = por %p175, %p176
      %p179 = scmp.ne.s32.totalorder %s164, %s178
      %p180 = scmp.eq.s32.totalorder %s28, 0
      %p181 = por %p179, %p180
      %s183 = sadd.s32 %s182, 1
      %p186 = scmp.eq.s32.totalorder %s22, 1
      %p187 = scmp.ne.s32.totalorder %s182, %s184
      %p188 = scmp.eq.s32.totalorder %s22, 0
      %p189 = por %p187, %p188
      %p190 = scmp.ne.s32.totalorder %s182, %s184
      %p191 = scmp.eq.s32.totalorder %s27, 1
      %p192 = por %p190, %p191
      %p193 = scmp.ne.s32.totalorder %s184, %s185
      %p194 = scmp.eq.s32.totalorder %s27, 0
      %p195 = por %p193, %p194
      %p196 = scmp.ne.s32.totalorder %s184, %s185
      %p197 = scmp.eq.s32.totalorder %s28, 1
      %p198 = por %p196, %p197
      %p200 = scmp.ne.s32.totalorder %s185, %s199
      %p201 = scmp.eq.s32.totalorder %s28, 0
      %p202 = por %p200, %p201
      %s203 = ssub.s32 %s22, %s29
      %p204 = scmp.eq.s32.totalorder %s203, 0
      %s206 = sadd.s32 %s205, 1
      %s207 = scalar_select %p204, %s205, %s206
      %p210 = pneg %p204
      %p211 = scmp.eq.s32.totalorder %s22, 1
      %p212 = por %p210, %p211
      %p213 = scmp.ne.s32.totalorder %s205, %s208
      %p214 = scmp.eq.s32.totalorder %s22, 0
      %p215 = por %p213, %p214
      %p216 = scmp.ne.s32.totalorder %s205, %s208
      %p217 = scmp.eq.s32.totalorder %s27, 1
      %p218 = por %p216, %p217
      %p219 = scmp.ne.s32.totalorder %s208, %s209
      %p220 = scmp.eq.s32.totalorder %s27, 0
      %p221 = por %p219, %p220
      %p222 = scmp.ne.s32.totalorder %s208, %s209
      %p223 = scmp.eq.s32.totalorder %s28, 1
      %p224 = por %p222, %p223
      %p226 = scmp.ne.s32.totalorder %s209, %s225
      %p227 = scmp.eq.s32.totalorder %s28, 0
      %p228 = por %p226, %p227
      %p229 = scmp.le.s32.totalorder 1, %s22
      %p230 = scmp.lt.s32.totalorder %s22, 3
      %p231 = pnand %p229, %p230
      %p232 = pneg %p231
      // Predicated region
      $region9: #{tpu_custom_call.1} parent=5 // pred_check
        _
      $region10: #{tpu_custom_call.1} parent=5 // pred_check_branch
        %234 = sbr.rel (%p231) target = $region12
      $region11: #{tpu_custom_call.1} parent=5 // pred_region
        %s235 = ssub.s32 %s22, 1
        // Predicated region
        $region13: #{tpu_custom_call.1} parent=11 // pred_check
          %p236 = pneg %p69
        $region14: #{tpu_custom_call.1} parent=11 // pred_check_branch
          %238 = sbr.rel (%p236) target = $region16
        $region15: #{tpu_custom_call.1} parent=11 // pred_region
          %s240 = ssub.s32 6144, 6144
          %241 = vsyncadd [#allocation6], %s240
          %s242 = sshll.u32 [#allocation5], 4
          %s243 = int_to_ptr.vmem [resolvable:$true] %s242
          %248 = dma.hbm_to_vmem [thread:$0]  %s1, 6144, %s243, [#allocation6], 128, 128, 8
        $region16: #{tpu_custom_call.1} parent=11 // pred_fallthru
          _
        // Predicated region
        $region17: #{tpu_custom_call.1} parent=11 // pred_check
          %p249 = pneg %p90
        $region18: #{tpu_custom_call.1} parent=11 // pred_check_branch
          %251 = sbr.rel (%p249) target = $region20
        $region19: #{tpu_custom_call.1} parent=11 // pred_region
          %s253 = ssub.s32 6144, 6144
          %254 = vsyncadd [#allocation6], %s253
          %s255 = sshll.u32 [#allocation7], 4
          %s256 = int_to_ptr.vmem [resolvable:$true] %s255
          %261 = dma.hbm_to_vmem [thread:$0]  %s2, 6144, %s256, [#allocation6], 128, 128, 8
        $region20: #{tpu_custom_call.1} parent=11 // pred_fallthru
          _
        // Predicated region
        $region21: #{tpu_custom_call.1} parent=11 // pred_check
          %p262 = pneg %p111
        $region22: #{tpu_custom_call.1} parent=11 // pred_check_branch
          %264 = sbr.rel (%p262) target = $region24
        $region23: #{tpu_custom_call.1} parent=11 // pred_region
          _
        $region24: #{tpu_custom_call.1} parent=11 // pred_fallthru
          _
        // Predicated region
        $region25: #{tpu_custom_call.1} parent=11 // pred_check
          %p265 = pneg %p132
        $region26: #{tpu_custom_call.1} parent=11 // pred_check_branch
          %267 = sbr.rel (%p265) target = $region28
        $region27: #{tpu_custom_call.1} parent=11 // pred_region
          _
        $region28: #{tpu_custom_call.1} parent=11 // pred_fallthru
          _
        // Predicated region
        $region29: #{tpu_custom_call.1} parent=11 // pred_check
          %p268 = pneg %p153
        $region30: #{tpu_custom_call.1} parent=11 // pred_check_branch
          %270 = sbr.rel (%p268) target = $region32
        $region31: #{tpu_custom_call.1} parent=11 // pred_region
          _
        $region32: #{tpu_custom_call.1} parent=11 // pred_fallthru
          _
        // Predicated region
        $region33: #{tpu_custom_call.1} parent=11 // pred_check
          %p271 = pneg %p174
        $region34: #{tpu_custom_call.1} parent=11 // pred_check_branch
          %273 = sbr.rel (%p271) target = $region36
        $region35: #{tpu_custom_call.1} parent=11 // pred_region
          _
        $region36: #{tpu_custom_call.1} parent=11 // pred_fallthru
          _
        // Predicated region
        $region37: #{tpu_custom_call.1} parent=11 // pred_check
          %p274 = pneg %p195
        $region38: #{tpu_custom_call.1} parent=11 // pred_check_branch
          %276 = sbr.rel (%p274) target = $region40
        $region39: #{tpu_custom_call.1} parent=11 // pred_region
          %s278 = ssub.s32 2048, 2048
          %279 = vsyncadd [#allocation9], %s278
          %s280 = sshll.u32 [#allocation8], 4
          %s281 = int_to_ptr.vmem [resolvable:$true] %s280
          %286 = dma.hbm_to_vmem [thread:$0]  %s7, 2048, %s281, [#allocation9], 128, 128, 8
        $region40: #{tpu_custom_call.1} parent=11 // pred_fallthru
          _
      $region12: #{tpu_custom_call.1} parent=5 // pred_fallthru
        _
      %p287 = scmp.lt.s32.totalorder %s22, 2
      // Predicated region
      $region41: #{tpu_custom_call.1} parent=5 // pred_check
        %p288 = pneg %p287
      $region42: #{tpu_custom_call.1} parent=5 // pred_check_branch
        %290 = sbr.rel (%p288) target = $region44
      $region43: #{tpu_custom_call.1} parent=5 // pred_region
        // Predicated region
        $region45: #{tpu_custom_call.1} parent=43 // pred_check
          %p291 = pneg %p42
        $region46: #{tpu_custom_call.1} parent=43 // pred_check_branch
          %293 = sbr.rel (%p291) target = $region48
        $region47: #{tpu_custom_call.1} parent=43 // pred_region
          %s294 = sand.u32 %s32, 1
          %s295 = scalar_lea.sflag [#allocation3], %s294
          %s296 = sand.u32 %s32, 1
          %s297 = smul.addr %s296, 16
          %s298 = scalar_lea.vmem [#allocation2], %s297
          %s300 = ssub.s32 256, 256
          %301 = vsyncadd %s295, %s300
          %s302 = smul.addr %s22, 2
          %s303 = smul.addr %s302, 128
          %s304 = scalar_lea.hbm %s0, %s303
          %s305 = sshll.u32 %s298, 4
          %s306 = int_to_ptr.vmem [resolvable:$true] %s305
          %311 = dma.hbm_to_vmem [thread:$0]  %s304, 256, %s306, %s295, 128, 128, 8
        $region48: #{tpu_custom_call.1} parent=43 // pred_fallthru
          _
      $region44: #{tpu_custom_call.1} parent=5 // pred_fallthru
        _
      %p312 = scmp.le.s32.totalorder 1, %s22
      %p313 = scmp.lt.s32.totalorder %s22, 3
      %p314 = pnand %p312, %p313
      %p315 = pneg %p314
      // Predicated region
      $region49: #{tpu_custom_call.1} parent=5 // pred_check
        _
      $region50: #{tpu_custom_call.1} parent=5 // pred_check_branch
        %317 = sbr.rel (%p314) target = $region52
      $region51: #{tpu_custom_call.1} parent=5 // pred_region
        %s318 = ssub.s32 %s22, 1
        %s319 = sand.u32 %s35, 1
        %s320 = scalar_lea.sflag [#allocation3], %s319
        %s321 = sand.u32 %s35, 1
        %s322 = smul.addr %s321, 16
        %s323 = scalar_lea.vmem [#allocation2], %s322
        // Predicated region
        $region53: #{tpu_custom_call.1} parent=51 // pred_check
          %p324 = pneg %p48
        $region54: #{tpu_custom_call.1} parent=51 // pred_check_branch
          %326 = sbr.rel (%p324) target = $region56
        $region55: #{tpu_custom_call.1} parent=51 // pred_region
          %327 = dma.done %s320, 256
        $region56: #{tpu_custom_call.1} parent=51 // pred_fallthru
          _
        // Predicated region
        $region57: #{tpu_custom_call.1} parent=51 // pred_check
          %p328 = pneg %p69
        $region58: #{tpu_custom_call.1} parent=51 // pred_check_branch
          %330 = sbr.rel (%p328) target = $region60
        $region59: #{tpu_custom_call.1} parent=51 // pred_region
          %331 = dma.done [#allocation6], 6144
        $region60: #{tpu_custom_call.1} parent=51 // pred_fallthru
          _
        // Predicated region
        $region61: #{tpu_custom_call.1} parent=51 // pred_check
          %p332 = pneg %p90
        $region62: #{tpu_custom_call.1} parent=51 // pred_check_branch
          %334 = sbr.rel (%p332) target = $region64
        $region63: #{tpu_custom_call.1} parent=51 // pred_region
          %335 = dma.done [#allocation6], 6144
        $region64: #{tpu_custom_call.1} parent=51 // pred_fallthru
          _
        // Predicated region
        $region65: #{tpu_custom_call.1} parent=51 // pred_check
          %p336 = pneg %p195
        $region66: #{tpu_custom_call.1} parent=51 // pred_check_branch
          %338 = sbr.rel (%p336) target = $region68
        $region67: #{tpu_custom_call.1} parent=51 // pred_region
          %339 = dma.done [#allocation9], 2048
        $region68: #{tpu_custom_call.1} parent=51 // pred_fallthru
          _
        %s340 = sand.u32 %s35, 1
        %s341 = scalar_lea.sflag [#allocation3], %s340
        %s342 = sand.u32 %s35, 1
        %s343 = smul.addr %s342, 16
        %s344 = scalar_lea.vmem [#allocation2], %s343
        %p345 = pneg %p48
        %p346 = pneg %p45
        %p347 = pneg %p69
        %p348 = pneg %p66
        %p349 = pneg %p90
        %p350 = pneg %p87
        %p351 = pneg %p111
        %p352 = pneg %p108
        %p353 = pneg %p132
        %p354 = pneg %p129
        %p355 = pneg %p153
        %p356 = pneg %p150
        %p357 = pneg %p174
        %p358 = pneg %p171
        %p359 = pneg %p195
        %p360 = pneg %p192
        %p361 = pneg %p221
        %p362 = pneg %p218
        %s363 = sand.u32 %s208, 1
        %s364 = scalar_lea.sflag [#allocation4], %s363
        %s365 = sand.u32 %s208, 1
        %s366 = smul.addr %s365, 16
        %s367 = scalar_lea.vmem [#allocation10], %s366
        %v368 = vld [vmem:[%s323] sm:$0xff]
        %v369 = vld [vmem:[%s323 + $0x8] sm:$0xff]
        %v370 = vld [vmem:[#allocation5] sm:$0xff]
        %v371 = vld [vmem:[#allocation5 + $0x8] sm:$0xff]
        %v372 = vld [vmem:[#allocation5 + $0x10] sm:$0xff]
        %v373 = vld [vmem:[#allocation5 + $0x18] sm:$0xff]
        %v374 = vld [vmem:[#allocation5 + $0x20] sm:$0xff]
        %v375 = vld [vmem:[#allocation5 + $0x28] sm:$0xff]
        %v376 = vld [vmem:[#allocation5 + $0x30] sm:$0xff]
        %v377 = vld [vmem:[#allocation5 + $0x38] sm:$0xff]
        %v378 = vld [vmem:[#allocation5 + $0x40] sm:$0xff]
        %v379 = vld [vmem:[#allocation5 + $0x48] sm:$0xff]
        %v380 = vld [vmem:[#allocation5 + $0x50] sm:$0xff]
        %v381 = vld [vmem:[#allocation5 + $0x58] sm:$0xff]
        %v382 = vld [vmem:[#allocation5 + $0x60] sm:$0xff]
        %v383 = vld [vmem:[#allocation5 + $0x68] sm:$0xff]
        %v384 = vld [vmem:[#allocation5 + $0x70] sm:$0xff]
        %v385 = vld [vmem:[#allocation5 + $0x78] sm:$0xff]
        %386 = vmatprep.subr.mxu0 0.0
        %387 = vmatpush1.msra.mxu0 %v385
        %388 = vmatprep.subr.mxu0 0.0
        %389 = vmatpush1.msra.mxu0 %v384
        %390 = vmatprep.subr.mxu0 0.0
        %391 = vmatpush1.msra.mxu0 %v383
        %392 = vmatprep.subr.mxu0 0.0
        %393 = vmatpush1.msra.mxu0 %v382
        %394 = vmatprep.subr.mxu0 0.0
        %395 = vmatpush1.msra.mxu0 %v381
        %396 = vmatprep.subr.mxu0 0.0
        %397 = vmatpush1.msra.mxu0 %v380
        %398 = vmatprep.subr.mxu0 0.0
        %399 = vmatpush1.msra.mxu0 %v379
        %400 = vmatprep.subr.mxu0 0.0
        %401 = vmatpush1.msra.mxu0 %v378
        %402 = vmatprep.subr.mxu0 0.0
        %403 = vmatpush1.msra.mxu0 %v377
        %404 = vmatprep.subr.mxu0 0.0
        %405 = vmatpush1.msra.mxu0 %v376
        %406 = vmatprep.subr.mxu0 0.0
        %407 = vmatpush1.msra.mxu0 %v375
        %408 = vmatprep.subr.mxu0 0.0
        %409 = vmatpush1.msra.mxu0 %v374
        %410 = vmatprep.subr.mxu0 0.0
        %411 = vmatpush1.msra.mxu0 %v373
        %412 = vmatprep.subr.mxu0 0.0
        %413 = vmatpush1.msra.mxu0 %v372
        %414 = vmatprep.subr.mxu0 0.0
        %415 = vmatpush1.msra.mxu0 %v371
        %416 = vmatprep.subr.mxu0 0.0
        %417 = vmatpush1.msra.mxu0 %v370
        %418 = vmatprep.subr.mxu0 0.0
        %419 = vmatpush2.msra.mxu0 0.0
        %420 = vmatprep.subr.mxu0 0.0
        %421 = vmatpush2.msra.mxu0 0.0
        %422 = vmatprep.subr.mxu0 0.0
        %423 = vmatpush2.msra.mxu0 0.0
        %424 = vmatprep.subr.mxu0 0.0
        %425 = vmatpush2.msra.mxu0 0.0
        %426 = vmatprep.subr.mxu0 0.0
        %427 = vmatpush2.msra.mxu0 0.0
        %428 = vmatprep.subr.mxu0 0.0
        %429 = vmatpush2.msra.mxu0 0.0
        %430 = vmatprep.subr.mxu0 0.0
        %431 = vmatpush2.msra.mxu0 0.0
        %432 = vmatprep.subr.mxu0 0.0
        %433 = vmatpush2.msra.mxu0 0.0
        %434 = vmatprep.subr.mxu0 0.0
        %435 = vmatpush2.msra.mxu0 0.0
        %436 = vmatprep.subr.mxu0 0.0
        %437 = vmatpush2.msra.mxu0 0.0
        %438 = vmatprep.subr.mxu0 0.0
        %439 = vmatpush2.msra.mxu0 0.0
        %440 = vmatprep.subr.mxu0 0.0
        %441 = vmatpush2.msra.mxu0 0.0
        %442 = vmatprep.subr.mxu0 0.0
        %443 = vmatpush2.msra.mxu0 0.0
        %444 = vmatprep.subr.mxu0 0.0
        %445 = vmatpush2.msra.mxu0 0.0
        %446 = vmatprep.subr.mxu0 0.0
        %447 = vmatpush2.msra.mxu0 0.0
        %448 = vmatprep.subr.mxu0 0.0
        %449 = vmatpush2.msra.mxu0 0.0
        %450 = vmatprep.mubr.f32.mxu0 0.0
        %451 = vmatmul.mubr.f32.gmra.mxu0 %v368
        %v452 = vpop.f32.mrf.mxu0
        %v453 = vadd.f32 0.0, %v452
        %v454 = vpop.f32.mrf.mxu0
        %455 = vmatprep.mubr.f32.mxu0 0.0
        %456 = vmatmul.mubr.f32.gmra.mxu0 %v369
        %v457 = vpop.f32.mrf.mxu0
        %v458 = vadd.f32 0.0, %v457
        %v459 = vpop.f32.mrf.mxu0
        %460 = vdwg.mxu0
        %s461 = scalar_lea.vmem [#allocation5], 128
        %v462 = vld [vmem:[%s461] sm:$0xff]
        %v463 = vld [vmem:[%s461 + $0x8] sm:$0xff]
        %v464 = vld [vmem:[%s461 + $0x10] sm:$0xff]
        %v465 = vld [vmem:[%s461 + $0x18] sm:$0xff]
        %v466 = vld [vmem:[%s461 + $0x20] sm:$0xff]
        %v467 = vld [vmem:[%s461 + $0x28] sm:$0xff]
        %v468 = vld [vmem:[%s461 + $0x30] sm:$0xff]
        %v469 = vld [vmem:[%s461 + $0x38] sm:$0xff]
        %v470 = vld [vmem:[%s461 + $0x40] sm:$0xff]
        %v471 = vld [vmem:[%s461 + $0x48] sm:$0xff]
        %v472 = vld [vmem:[%s461 + $0x50] sm:$0xff]
        %v473 = vld [vmem:[%s461 + $0x58] sm:$0xff]
        %v474 = vld [vmem:[%s461 + $0x60] sm:$0xff]
        %v475 = vld [vmem:[%s461 + $0x68] sm:$0xff]
        %v476 = vld [vmem:[%s461 + $0x70] sm:$0xff]
        %v477 = vld [vmem:[%s461 + $0x78] sm:$0xff]
        %478 = vmatprep.subr.mxu0 0.0
        %479 = vmatpush1.msra.mxu0 %v477
        %480 = vmatprep.subr.mxu0 0.0
        %481 = vmatpush1.msra.mxu0 %v476
        %482 = vmatprep.subr.mxu0 0.0
        %483 = vmatpush1.msra.mxu0 %v475
        %484 = vmatprep.subr.mxu0 0.0
        %485 = vmatpush1.msra.mxu0 %v474
        %486 = vmatprep.subr.mxu0 0.0
        %487 = vmatpush1.msra.mxu0 %v473
        %488 = vmatprep.subr.mxu0 0.0
        %489 = vmatpush1.msra.mxu0 %v472
        %490 = vmatprep.subr.mxu0 0.0
        %491 = vmatpush1.msra.mxu0 %v471
        %492 = vmatprep.subr.mxu0 0.0
        %493 = vmatpush1.msra.mxu0 %v470
        %494 = vmatprep.subr.mxu0 0.0
        %495 = vmatpush1.msra.mxu0 %v469
        %496 = vmatprep.subr.mxu0 0.0
        %497 = vmatpush1.msra.mxu0 %v468
        %498 = vmatprep.subr.mxu0 0.0
        %499 = vmatpush1.msra.mxu0 %v467
        %500 = vmatprep.subr.mxu0 0.0
        %501 = vmatpush1.msra.mxu0 %v466
        %502 = vmatprep.subr.mxu0 0.0
        %503 = vmatpush1.msra.mxu0 %v465
        %504 = vmatprep.subr.mxu0 0.0
        %505 = vmatpush1.msra.mxu0 %v464
        %506 = vmatprep.subr.mxu0 0.0
        %507 = vmatpush1.msra.mxu0 %v463
        %508 = vmatprep.subr.mxu0 0.0
        %509 = vmatpush1.msra.mxu0 %v462
        %510 = vmatprep.subr.mxu0 0.0
        %511 = vmatpush2.msra.mxu0 0.0
        %512 = vmatprep.subr.mxu0 0.0
        %513 = vmatpush2.msra.mxu0 0.0
        %514 = vmatprep.subr.mxu0 0.0
        %515 = vmatpush2.msra.mxu0 0.0
        %516 = vmatprep.subr.mxu0 0.0
        %517 = vmatpush2.msra.mxu0 0.0
        %518 = vmatprep.subr.mxu0 0.0
        %519 = vmatpush2.msra.mxu0 0.0
        %520 = vmatprep.subr.mxu0 0.0
        %521 = vmatpush2.msra.mxu0 0.0
        %522 = vmatprep.subr.mxu0 0.0
        %523 = vmatpush2.msra.mxu0 0.0
        %524 = vmatprep.subr.mxu0 0.0
        %525 = vmatpush2.msra.mxu0 0.0
        %526 = vmatprep.subr.mxu0 0.0
        %527 = vmatpush2.msra.mxu0 0.0
        %528 = vmatprep.subr.mxu0 0.0
        %529 = vmatpush2.msra.mxu0 0.0
        %530 = vmatprep.subr.mxu0 0.0
        %531 = vmatpush2.msra.mxu0 0.0
        %532 = vmatprep.subr.mxu0 0.0
        %533 = vmatpush2.msra.mxu0 0.0
        %534 = vmatprep.subr.mxu0 0.0
        %535 = vmatpush2.msra.mxu0 0.0
        %536 = vmatprep.subr.mxu0 0.0
        %537 = vmatpush2.msra.mxu0 0.0
        %538 = vmatprep.subr.mxu0 0.0
        %539 = vmatpush2.msra.mxu0 0.0
        %540 = vmatprep.subr.mxu0 0.0
        %541 = vmatpush2.msra.mxu0 0.0
        %542 = vmatprep.mubr.f32.mxu0 0.0
        %543 = vmatmul.mubr.f32.gmra.mxu0 %v368
        %v544 = vpop.f32.mrf.mxu0
        %v545 = vadd.f32 0.0, %v544
        %v546 = vpop.f32.mrf.mxu0
        %547 = vmatprep.mubr.f32.mxu0 0.0
        %548 = vmatmul.mubr.f32.gmra.mxu0 %v369
        %v549 = vpop.f32.mrf.mxu0
        %v550 = vadd.f32 0.0, %v549
        %v551 = vpop.f32.mrf.mxu0
        %552 = vdwg.mxu0
        %s553 = scalar_lea.vmem [#allocation5], 256
        %v554 = vld [vmem:[%s553] sm:$0xff]
        %v555 = vld [vmem:[%s553 + $0x8] sm:$0xff]
        %v556 = vld [vmem:[%s553 + $0x10] sm:$0xff]
        %v557 = vld [vmem:[%s553 + $0x18] sm:$0xff]
        %v558 = vld [vmem:[%s553 + $0x20] sm:$0xff]
        %v559 = vld [vmem:[%s553 + $0x28] sm:$0xff]
        %v560 = vld [vmem:[%s553 + $0x30] sm:$0xff]
        %v561 = vld [vmem:[%s553 + $0x38] sm:$0xff]
        %v562 = vld [vmem:[%s553 + $0x40] sm:$0xff]
        %v563 = vld [vmem:[%s553 + $0x48] sm:$0xff]
        %v564 = vld [vmem:[%s553 + $0x50] sm:$0xff]
        %v565 = vld [vmem:[%s553 + $0x58] sm:$0xff]
        %v566 = vld [vmem:[%s553 + $0x60] sm:$0xff]
        %v567 = vld [vmem:[%s553 + $0x68] sm:$0xff]
        %v568 = vld [vmem:[%s553 + $0x70] sm:$0xff]
        %v569 = vld [vmem:[%s553 + $0x78] sm:$0xff]
        %570 = vmatprep.subr.mxu0 0.0
        %571 = vmatpush1.msra.mxu0 %v569
        %572 = vmatprep.subr.mxu0 0.0
        %573 = vmatpush1.msra.mxu0 %v568
        %574 = vmatprep.subr.mxu0 0.0
        %575 = vmatpush1.msra.mxu0 %v567
        %576 = vmatprep.subr.mxu0 0.0
        %577 = vmatpush1.msra.mxu0 %v566
        %578 = vmatprep.subr.mxu0 0.0
        %579 = vmatpush1.msra.mxu0 %v565
        %580 = vmatprep.subr.mxu0 0.0
        %581 = vmatpush1.msra.mxu0 %v564
        %582 = vmatprep.subr.mxu0 0.0
        %583 = vmatpush1.msra.mxu0 %v563
        %584 = vmatprep.subr.mxu0 0.0
        %585 = vmatpush1.msra.mxu0 %v562
        %586 = vmatprep.subr.mxu0 0.0
        %587 = vmatpush1.msra.mxu0 %v561
        %588 = vmatprep.subr.mxu0 0.0
        %589 = vmatpush1.msra.mxu0 %v560
        %590 = vmatprep.subr.mxu0 0.0
        %591 = vmatpush1.msra.mxu0 %v559
        %592 = vmatprep.subr.mxu0 0.0
        %593 = vmatpush1.msra.mxu0 %v558
        %594 = vmatprep.subr.mxu0 0.0
        %595 = vmatpush1.msra.mxu0 %v557
        %596 = vmatprep.subr.mxu0 0.0
        %597 = vmatpush1.msra.mxu0 %v556
        %598 = vmatprep.subr.mxu0 0.0
        %599 = vmatpush1.msra.mxu0 %v555
        %600 = vmatprep.subr.mxu0 0.0
        %601 = vmatpush1.msra.mxu0 %v554
        %602 = vmatprep.subr.mxu0 0.0
        %603 = vmatpush2.msra.mxu0 0.0
        %604 = vmatprep.subr.mxu0 0.0
        %605 = vmatpush2.msra.mxu0 0.0
        %606 = vmatprep.subr.mxu0 0.0
        %607 = vmatpush2.msra.mxu0 0.0
        %608 = vmatprep.subr.mxu0 0.0
        %609 = vmatpush2.msra.mxu0 0.0
        %610 = vmatprep.subr.mxu0 0.0
        %611 = vmatpush2.msra.mxu0 0.0
        %612 = vmatprep.subr.mxu0 0.0
        %613 = vmatpush2.msra.mxu0 0.0
        %614 = vmatprep.subr.mxu0 0.0
        %615 = vmatpush2.msra.mxu0 0.0
        %616 = vmatprep.subr.mxu0 0.0
        %617 = vmatpush2.msra.mxu0 0.0
        %618 = vmatprep.subr.mxu0 0.0
        %619 = vmatpush2.msra.mxu0 0.0
        %620 = vmatprep.subr.mxu0 0.0
        %621 = vmatpush2.msra.mxu0 0.0
        %622 = vmatprep.subr.mxu0 0.0
        %623 = vmatpush2.msra.mxu0 0.0
        %624 = vmatprep.subr.mxu0 0.0
        %625 = vmatpush2.msra.mxu0 0.0
        %626 = vmatprep.subr.mxu0 0.0
        %627 = vmatpush2.msra.mxu0 0.0
        %628 = vmatprep.subr.mxu0 0.0
        %629 = vmatpush2.msra.mxu0 0.0
        %630 = vmatprep.subr.mxu0 0.0
        %631 = vmatpush2.msra.mxu0 0.0
        %632 = vmatprep.subr.mxu0 0.0
        %633 = vmatpush2.msra.mxu0 0.0
        %634 = vmatprep.mubr.f32.mxu0 0.0
        %635 = vmatmul.mubr.f32.gmra.mxu0 %v368
        %v636 = vpop.f32.mrf.mxu0
        %v637 = vadd.f32 0.0, %v636
        %v638 = vpop.f32.mrf.mxu0
        %639 = vmatprep.mubr.f32.mxu0 0.0
        %640 = vmatmul.mubr.f32.gmra.mxu0 %v369
        %v641 = vpop.f32.mrf.mxu0
        %v642 = vadd.f32 0.0, %v641
        %v643 = vpop.f32.mrf.mxu0
        %644 = vdwg.mxu0
        %vm647 = vcmask 1040384
        %v648 = vrot.slane %v453, 7
        %v649 = vrot.slane %v458, 7
        %v650 = vsel %vm647, %v648, %v649
        %v653 = vsel %vm647, 0.0, %v648
        %vm656 = vcmask 1046528
        %v657 = vrot.slane %v637, 1
        %v658 = vrot.slane %v642, 1
        %v659 = vsel %vm656, %v657, %v658
        %v662 = vsel %vm656, %v658, 0.0
        %v663 = vadd.f32 %v653, %v545
        %v664 = vadd.f32 %v650, %v550
        %v665 = vadd.f32 %v663, %v659
        %v666 = vadd.f32 %v664, %v662
        %v667 = vadd.f32 %v665, %v666
        %v668 = vrot.slane %v667, 4
        %v669 = vadd.f32 %v667, %v668
        %v670 = vrot.slane %v669, 2
        %v671 = vadd.f32 %v669, %v670
        %v672 = vrot.slane %v671, 1
        %v673 = vadd.f32 %v671, %v672
        %v674 = vmul.f32 %v665, %v665
        %v675 = vmul.f32 %v666, %v666
        %v676 = vadd.f32 %v674, %v675
        %v677 = vrot.slane %v676, 4
        %v678 = vadd.f32 %v676, %v677
        %v679 = vrot.slane %v678, 2
        %v680 = vadd.f32 %v678, %v679
        %v681 = vrot.slane %v680, 1
        %v682 = vadd.f32 %v680, %v681
        %v683 = vld [vmem:[#allocation8] sm:$0xff]
        %v684 = vld [vmem:[#allocation8 + $0x8] sm:$0xff]
        %v685 = vld [vmem:[#allocation8 + $0x10] sm:$0xff]
        %v686 = vld [vmem:[#allocation8 + $0x18] sm:$0xff]
        %v687 = vld [vmem:[#allocation8 + $0x20] sm:$0xff]
        %v688 = vld [vmem:[#allocation8 + $0x28] sm:$0xff]
        %v689 = vld [vmem:[#allocation8 + $0x30] sm:$0xff]
        %v690 = vld [vmem:[#allocation8 + $0x38] sm:$0xff]
        %v691 = vld [vmem:[#allocation8 + $0x40] sm:$0xff]
        %v692 = vld [vmem:[#allocation8 + $0x48] sm:$0xff]
        %v693 = vld [vmem:[#allocation8 + $0x50] sm:$0xff]
        %v694 = vld [vmem:[#allocation8 + $0x58] sm:$0xff]
        %v695 = vld [vmem:[#allocation8 + $0x60] sm:$0xff]
        %v696 = vld [vmem:[#allocation8 + $0x68] sm:$0xff]
        %v697 = vld [vmem:[#allocation8 + $0x70] sm:$0xff]
        %v698 = vld [vmem:[#allocation8 + $0x78] sm:$0xff]
        %699 = vmatprep.subr.mxu0 0.0
        %700 = vmatpush1.msra.mxu0 %v698
        %701 = vmatprep.subr.mxu0 0.0
        %702 = vmatpush1.msra.mxu0 %v697
        %703 = vmatprep.subr.mxu0 0.0
        %704 = vmatpush1.msra.mxu0 %v696
        %705 = vmatprep.subr.mxu0 0.0
        %706 = vmatpush1.msra.mxu0 %v695
        %707 = vmatprep.subr.mxu0 0.0
        %708 = vmatpush1.msra.mxu0 %v694
        %709 = vmatprep.subr.mxu0 0.0
        %710 = vmatpush1.msra.mxu0 %v693
        %711 = vmatprep.subr.mxu0 0.0
        %712 = vmatpush1.msra.mxu0 %v692
        %713 = vmatprep.subr.mxu0 0.0
        %714 = vmatpush1.msra.mxu0 %v691
        %715 = vmatprep.subr.mxu0 0.0
        %716 = vmatpush1.msra.mxu0 %v690
        %717 = vmatprep.subr.mxu0 0.0
        %718 = vmatpush1.msra.mxu0 %v689
        %719 = vmatprep.subr.mxu0 0.0
        %720 = vmatpush1.msra.mxu0 %v688
        %721 = vmatprep.subr.mxu0 0.0
        %722 = vmatpush1.msra.mxu0 %v687
        %723 = vmatprep.subr.mxu0 0.0
        %724 = vmatpush1.msra.mxu0 %v686
        %725 = vmatprep.subr.mxu0 0.0
        %726 = vmatpush1.msra.mxu0 %v685
        %727 = vmatprep.subr.mxu0 0.0
        %728 = vmatpush1.msra.mxu0 %v684
        %729 = vmatprep.subr.mxu0 0.0
        %730 = vmatpush1.msra.mxu0 %v683
        %731 = vmatprep.subr.mxu0 0.0
        %732 = vmatpush2.msra.mxu0 0.0
        %733 = vmatprep.subr.mxu0 0.0
        %734 = vmatpush2.msra.mxu0 0.0
        %735 = vmatprep.subr.mxu0 0.0
        %736 = vmatpush2.msra.mxu0 0.0
        %737 = vmatprep.subr.mxu0 0.0
        %738 = vmatpush2.msra.mxu0 0.0
        %739 = vmatprep.subr.mxu0 0.0
        %740 = vmatpush2.msra.mxu0 0.0
        %741 = vmatprep.subr.mxu0 0.0
        %742 = vmatpush2.msra.mxu0 0.0
        %743 = vmatprep.subr.mxu0 0.0
        %744 = vmatpush2.msra.mxu0 0.0
        %745 = vmatprep.subr.mxu0 0.0
        %746 = vmatpush2.msra.mxu0 0.0
        %747 = vmatprep.subr.mxu0 0.0
        %748 = vmatpush2.msra.mxu0 0.0
        %749 = vmatprep.subr.mxu0 0.0
        %750 = vmatpush2.msra.mxu0 0.0
        %751 = vmatprep.subr.mxu0 0.0
        %752 = vmatpush2.msra.mxu0 0.0
        %753 = vmatprep.subr.mxu0 0.0
        %754 = vmatpush2.msra.mxu0 0.0
        %755 = vmatprep.subr.mxu0 0.0
        %756 = vmatpush2.msra.mxu0 0.0
        %757 = vmatprep.subr.mxu0 0.0
        %758 = vmatpush2.msra.mxu0 0.0
        %759 = vmatprep.subr.mxu0 0.0
        %760 = vmatpush2.msra.mxu0 0.0
        %761 = vmatprep.subr.mxu0 0.0
        %762 = vmatpush2.msra.mxu0 0.0
        %763 = vmatprep.mubr.f32.mxu0 0.0
        %764 = vmatmul.mubr.f32.gmra.mxu0 %v673
        %v765 = vpop.f32.mrf.mxu0
        %v766 = vadd.f32 0.0, %v765
        %v767 = vpop.f32.mrf.mxu0
        %768 = vdwg.mxu0
        %769 = vmatprep.subr.mxu0 0.0
        %770 = vmatpush1.msra.mxu0 %v698
        %771 = vmatprep.subr.mxu0 0.0
        %772 = vmatpush1.msra.mxu0 %v697
        %773 = vmatprep.subr.mxu0 0.0
        %774 = vmatpush1.msra.mxu0 %v696
        %775 = vmatprep.subr.mxu0 0.0
        %776 = vmatpush1.msra.mxu0 %v695
        %777 = vmatprep.subr.mxu0 0.0
        %778 = vmatpush1.msra.mxu0 %v694
        %779 = vmatprep.subr.mxu0 0.0
        %780 = vmatpush1.msra.mxu0 %v693
        %781 = vmatprep.subr.mxu0 0.0
        %782 = vmatpush1.msra.mxu0 %v692
        %783 = vmatprep.subr.mxu0 0.0
        %784 = vmatpush1.msra.mxu0 %v691
        %785 = vmatprep.subr.mxu0 0.0
        %786 = vmatpush1.msra.mxu0 %v690
        %787 = vmatprep.subr.mxu0 0.0
        %788 = vmatpush1.msra.mxu0 %v689
        %789 = vmatprep.subr.mxu0 0.0
        %790 = vmatpush1.msra.mxu0 %v688
        %791 = vmatprep.subr.mxu0 0.0
        %792 = vmatpush1.msra.mxu0 %v687
        %793 = vmatprep.subr.mxu0 0.0
        %794 = vmatpush1.msra.mxu0 %v686
        %795 = vmatprep.subr.mxu0 0.0
        %796 = vmatpush1.msra.mxu0 %v685
        %797 = vmatprep.subr.mxu0 0.0
        %798 = vmatpush1.msra.mxu0 %v684
        %799 = vmatprep.subr.mxu0 0.0
        %800 = vmatpush1.msra.mxu0 %v683
        %801 = vmatprep.subr.mxu0 0.0
        %802 = vmatpush2.msra.mxu0 0.0
        %803 = vmatprep.subr.mxu0 0.0
        %804 = vmatpush2.msra.mxu0 0.0
        %805 = vmatprep.subr.mxu0 0.0
        %806 = vmatpush2.msra.mxu0 0.0
        %807 = vmatprep.subr.mxu0 0.0
        %808 = vmatpush2.msra.mxu0 0.0
        %809 = vmatprep.subr.mxu0 0.0
        %810 = vmatpush2.msra.mxu0 0.0
        %811 = vmatprep.subr.mxu0 0.0
        %812 = vmatpush2.msra.mxu0 0.0
        %813 = vmatprep.subr.mxu0 0.0
        %814 = vmatpush2.msra.mxu0 0.0
        %815 = vmatprep.subr.mxu0 0.0
        %816 = vmatpush2.msra.mxu0 0.0
        %817 = vmatprep.subr.mxu0 0.0
        %818 = vmatpush2.msra.mxu0 0.0
        %819 = vmatprep.subr.mxu0 0.0
        %820 = vmatpush2.msra.mxu0 0.0
        %821 = vmatprep.subr.mxu0 0.0
        %822 = vmatpush2.msra.mxu0 0.0
        %823 = vmatprep.subr.mxu0 0.0
        %824 = vmatpush2.msra.mxu0 0.0
        %825 = vmatprep.subr.mxu0 0.0
        %826 = vmatpush2.msra.mxu0 0.0
        %827 = vmatprep.subr.mxu0 0.0
        %828 = vmatpush2.msra.mxu0 0.0
        %829 = vmatprep.subr.mxu0 0.0
        %830 = vmatpush2.msra.mxu0 0.0
        %831 = vmatprep.subr.mxu0 0.0
        %832 = vmatpush2.msra.mxu0 0.0
        %833 = vmatprep.mubr.f32.mxu0 0.0
        %834 = vmatmul.mubr.f32.gmra.mxu0 %v682
        %v835 = vpop.f32.mrf.mxu0
        %v836 = vadd.f32 0.0, %v835
        %v837 = vpop.f32.mrf.mxu0
        %838 = vdwg.mxu0
        %v839 = vmul.f32 %v766, %v766
        %v840 = vsub.f32 %v836, %v839
        %v841 = vmax.f32 %v840, 0.0
        %v842 = vadd.f32 %v841, 1e-05
        %v843 = vrsqrt.pop %v842
        %v844 = vld [vmem:[%s3] sm:$0x1]
        %v845 = vmul.f32 %v844, %v843
        %v846 = vld [vmem:[%s4] sm:$0x1]
        %v847 = vmul.f32 %v766, %v845
        %v848 = vsub.f32 %v846, %v847
        %v850 = vlaneseq
        %v851 = vshrl.u32 %v850, 7
        %v852 = vsub.s32 0, %v851
        %v853 = vrot.slane %v845, %v852
        %v855 = vmul.f32 %v665, %v853
        %v856 = vmul.f32 %v666, %v853
        %v858 = vlaneseq
        %v859 = vshrl.u32 %v858, 7
        %v860 = vsub.s32 0, %v859
        %v861 = vrot.slane %v848, %v860
        %v863 = vadd.f32 %v855, %v861
        %v864 = vadd.f32 %v856, %v861
        %v865 = vmax.f32 %v863, 0.0
        %v866 = vmax.f32 %v864, 0.0
        %v867 = vld [vmem:[#allocation7] sm:$0xff]
        %v868 = vld [vmem:[#allocation7 + $0x8] sm:$0xff]
        %v869 = vld [vmem:[#allocation7 + $0x10] sm:$0xff]
        %v870 = vld [vmem:[#allocation7 + $0x18] sm:$0xff]
        %v871 = vld [vmem:[#allocation7 + $0x20] sm:$0xff]
        %v872 = vld [vmem:[#allocation7 + $0x28] sm:$0xff]
        %v873 = vld [vmem:[#allocation7 + $0x30] sm:$0xff]
        %v874 = vld [vmem:[#allocation7 + $0x38] sm:$0xff]
        %v875 = vld [vmem:[#allocation7 + $0x40] sm:$0xff]
        %v876 = vld [vmem:[#allocation7 + $0x48] sm:$0xff]
        %v877 = vld [vmem:[#allocation7 + $0x50] sm:$0xff]
        %v878 = vld [vmem:[#allocation7 + $0x58] sm:$0xff]
        %v879 = vld [vmem:[#allocation7 + $0x60] sm:$0xff]
        %v880 = vld [vmem:[#allocation7 + $0x68] sm:$0xff]
        %v881 = vld [vmem:[#allocation7 + $0x70] sm:$0xff]
        %v882 = vld [vmem:[#allocation7 + $0x78] sm:$0xff]
        %883 = vmatprep.subr.mxu0 0.0
        %884 = vmatpush1.msra.mxu0 %v882
        %885 = vmatprep.subr.mxu0 0.0
        %886 = vmatpush1.msra.mxu0 %v881
        %887 = vmatprep.subr.mxu0 0.0
        %888 = vmatpush1.msra.mxu0 %v880
        %889 = vmatprep.subr.mxu0 0.0
        %890 = vmatpush1.msra.mxu0 %v879
        %891 = vmatprep.subr.mxu0 0.0
        %892 = vmatpush1.msra.mxu0 %v878
        %893 = vmatprep.subr.mxu0 0.0
        %894 = vmatpush1.msra.mxu0 %v877
        %895 = vmatprep.subr.mxu0 0.0
        %896 = vmatpush1.msra.mxu0 %v876
        %897 = vmatprep.subr.mxu0 0.0
        %898 = vmatpush1.msra.mxu0 %v875
        %899 = vmatprep.subr.mxu0 0.0
        %900 = vmatpush1.msra.mxu0 %v874
        %901 = vmatprep.subr.mxu0 0.0
        %902 = vmatpush1.msra.mxu0 %v873
        %903 = vmatprep.subr.mxu0 0.0
        %904 = vmatpush1.msra.mxu0 %v872
        %905 = vmatprep.subr.mxu0 0.0
        %906 = vmatpush1.msra.mxu0 %v871
        %907 = vmatprep.subr.mxu0 0.0
        %908 = vmatpush1.msra.mxu0 %v870
        %909 = vmatprep.subr.mxu0 0.0
        %910 = vmatpush1.msra.mxu0 %v869
        %911 = vmatprep.subr.mxu0 0.0
        %912 = vmatpush1.msra.mxu0 %v868
        %913 = vmatprep.subr.mxu0 0.0
        %914 = vmatpush1.msra.mxu0 %v867
        %915 = vmatprep.subr.mxu0 0.0
        %916 = vmatpush2.msra.mxu0 0.0
        %917 = vmatprep.subr.mxu0 0.0
        %918 = vmatpush2.msra.mxu0 0.0
        %919 = vmatprep.subr.mxu0 0.0
        %920 = vmatpush2.msra.mxu0 0.0
        %921 = vmatprep.subr.mxu0 0.0
        %922 = vmatpush2.msra.mxu0 0.0
        %923 = vmatprep.subr.mxu0 0.0
        %924 = vmatpush2.msra.mxu0 0.0
        %925 = vmatprep.subr.mxu0 0.0
        %926 = vmatpush2.msra.mxu0 0.0
        %927 = vmatprep.subr.mxu0 0.0
        %928 = vmatpush2.msra.mxu0 0.0
        %929 = vmatprep.subr.mxu0 0.0
        %930 = vmatpush2.msra.mxu0 0.0
        %931 = vmatprep.subr.mxu0 0.0
        %932 = vmatpush2.msra.mxu0 0.0
        %933 = vmatprep.subr.mxu0 0.0
        %934 = vmatpush2.msra.mxu0 0.0
        %935 = vmatprep.subr.mxu0 0.0
        %936 = vmatpush2.msra.mxu0 0.0
        %937 = vmatprep.subr.mxu0 0.0
        %938 = vmatpush2.msra.mxu0 0.0
        %939 = vmatprep.subr.mxu0 0.0
        %940 = vmatpush2.msra.mxu0 0.0
        %941 = vmatprep.subr.mxu0 0.0
        %942 = vmatpush2.msra.mxu0 0.0
        %943 = vmatprep.subr.mxu0 0.0
        %944 = vmatpush2.msra.mxu0 0.0
        %945 = vmatprep.subr.mxu0 0.0
        %946 = vmatpush2.msra.mxu0 0.0
        %947 = vmatprep.mubr.f32.mxu0 0.0
        %948 = vmatmul.mubr.f32.gmra.mxu0 %v865
        %v949 = vpop.f32.mrf.mxu0
        %v950 = vadd.f32 0.0, %v949
        %v951 = vpop.f32.mrf.mxu0
        %952 = vmatprep.mubr.f32.mxu0 0.0
        %953 = vmatmul.mubr.f32.gmra.mxu0 %v866
        %v954 = vpop.f32.mrf.mxu0
        %v955 = vadd.f32 0.0, %v954
        %v956 = vpop.f32.mrf.mxu0
        %957 = vdwg.mxu0
        %s958 = scalar_lea.vmem [#allocation7], 128
        %v959 = vld [vmem:[%s958] sm:$0xff]
        %v960 = vld [vmem:[%s958 + $0x8] sm:$0xff]
        %v961 = vld [vmem:[%s958 + $0x10] sm:$0xff]
        %v962 = vld [vmem:[%s958 + $0x18] sm:$0xff]
        %v963 = vld [vmem:[%s958 + $0x20] sm:$0xff]
        %v964 = vld [vmem:[%s958 + $0x28] sm:$0xff]
        %v965 = vld [vmem:[%s958 + $0x30] sm:$0xff]
        %v966 = vld [vmem:[%s958 + $0x38] sm:$0xff]
        %v967 = vld [vmem:[%s958 + $0x40] sm:$0xff]
        %v968 = vld [vmem:[%s958 + $0x48] sm:$0xff]
        %v969 = vld [vmem:[%s958 + $0x50] sm:$0xff]
        %v970 = vld [vmem:[%s958 + $0x58] sm:$0xff]
        %v971 = vld [vmem:[%s958 + $0x60] sm:$0xff]
        %v972 = vld [vmem:[%s958 + $0x68] sm:$0xff]
        %v973 = vld [vmem:[%s958 + $0x70] sm:$0xff]
        %v974 = vld [vmem:[%s958 + $0x78] sm:$0xff]
        %975 = vmatprep.subr.mxu0 0.0
        %976 = vmatpush1.msra.mxu0 %v974
        %977 = vmatprep.subr.mxu0 0.0
        %978 = vmatpush1.msra.mxu0 %v973
        %979 = vmatprep.subr.mxu0 0.0
        %980 = vmatpush1.msra.mxu0 %v972
        %981 = vmatprep.subr.mxu0 0.0
        %982 = vmatpush1.msra.mxu0 %v971
        %983 = vmatprep.subr.mxu0 0.0
        %984 = vmatpush1.msra.mxu0 %v970
        %985 = vmatprep.subr.mxu0 0.0
        %986 = vmatpush1.msra.mxu0 %v969
        %987 = vmatprep.subr.mxu0 0.0
        %988 = vmatpush1.msra.mxu0 %v968
        %989 = vmatprep.subr.mxu0 0.0
        %990 = vmatpush1.msra.mxu0 %v967
        %991 = vmatprep.subr.mxu0 0.0
        %992 = vmatpush1.msra.mxu0 %v966
        %993 = vmatprep.subr.mxu0 0.0
        %994 = vmatpush1.msra.mxu0 %v965
        %995 = vmatprep.subr.mxu0 0.0
        %996 = vmatpush1.msra.mxu0 %v964
        %997 = vmatprep.subr.mxu0 0.0
        %998 = vmatpush1.msra.mxu0 %v963
        %999 = vmatprep.subr.mxu0 0.0
        %1000 = vmatpush1.msra.mxu0 %v962
        %1001 = vmatprep.subr.mxu0 0.0
        %1002 = vmatpush1.msra.mxu0 %v961
        %1003 = vmatprep.subr.mxu0 0.0
        %1004 = vmatpush1.msra.mxu0 %v960
        %1005 = vmatprep.subr.mxu0 0.0
        %1006 = vmatpush1.msra.mxu0 %v959
        %1007 = vmatprep.subr.mxu0 0.0
        %1008 = vmatpush2.msra.mxu0 0.0
        %1009 = vmatprep.subr.mxu0 0.0
        %1010 = vmatpush2.msra.mxu0 0.0
        %1011 = vmatprep.subr.mxu0 0.0
        %1012 = vmatpush2.msra.mxu0 0.0
        %1013 = vmatprep.subr.mxu0 0.0
        %1014 = vmatpush2.msra.mxu0 0.0
        %1015 = vmatprep.subr.mxu0 0.0
        %1016 = vmatpush2.msra.mxu0 0.0
        %1017 = vmatprep.subr.mxu0 0.0
        %1018 = vmatpush2.msra.mxu0 0.0
        %1019 = vmatprep.subr.mxu0 0.0
        %1020 = vmatpush2.msra.mxu0 0.0
        %1021 = vmatprep.subr.mxu0 0.0
        %1022 = vmatpush2.msra.mxu0 0.0
        %1023 = vmatprep.subr.mxu0 0.0
        %1024 = vmatpush2.msra.mxu0 0.0
        %1025 = vmatprep.subr.mxu0 0.0
        %1026 = vmatpush2.msra.mxu0 0.0
        %1027 = vmatprep.subr.mxu0 0.0
        %1028 = vmatpush2.msra.mxu0 0.0
        %1029 = vmatprep.subr.mxu0 0.0
        %1030 = vmatpush2.msra.mxu0 0.0
        %1031 = vmatprep.subr.mxu0 0.0
        %1032 = vmatpush2.msra.mxu0 0.0
        %1033 = vmatprep.subr.mxu0 0.0
        %1034 = vmatpush2.msra.mxu0 0.0
        %1035 = vmatprep.subr.mxu0 0.0
        %1036 = vmatpush2.msra.mxu0 0.0
        %1037 = vmatprep.subr.mxu0 0.0
        %1038 = vmatpush2.msra.mxu0 0.0
        %1039 = vmatprep.mubr.f32.mxu0 0.0
        %1040 = vmatmul.mubr.f32.gmra.mxu0 %v865
        %v1041 = vpop.f32.mrf.mxu0
        %v1042 = vadd.f32 0.0, %v1041
        %v1043 = vpop.f32.mrf.mxu0
        %1044 = vmatprep.mubr.f32.mxu0 0.0
        %1045 = vmatmul.mubr.f32.gmra.mxu0 %v866
        %v1046 = vpop.f32.mrf.mxu0
        %v1047 = vadd.f32 0.0, %v1046
        %v1048 = vpop.f32.mrf.mxu0
        %1049 = vdwg.mxu0
        %s1050 = scalar_lea.vmem [#allocation7], 256
        %v1051 = vld [vmem:[%s1050] sm:$0xff]
        %v1052 = vld [vmem:[%s1050 + $0x8] sm:$0xff]
        %v1053 = vld [vmem:[%s1050 + $0x10] sm:$0xff]
        %v1054 = vld [vmem:[%s1050 + $0x18] sm:$0xff]
        %v1055 = vld [vmem:[%s1050 + $0x20] sm:$0xff]
        %v1056 = vld [vmem:[%s1050 + $0x28] sm:$0xff]
        %v1057 = vld [vmem:[%s1050 + $0x30] sm:$0xff]
        %v1058 = vld [vmem:[%s1050 + $0x38] sm:$0xff]
        %v1059 = vld [vmem:[%s1050 + $0x40] sm:$0xff]
        %v1060 = vld [vmem:[%s1050 + $0x48] sm:$0xff]
        %v1061 = vld [vmem:[%s1050 + $0x50] sm:$0xff]
        %v1062 = vld [vmem:[%s1050 + $0x58] sm:$0xff]
        %v1063 = vld [vmem:[%s1050 + $0x60] sm:$0xff]
        %v1064 = vld [vmem:[%s1050 + $0x68] sm:$0xff]
        %v1065 = vld [vmem:[%s1050 + $0x70] sm:$0xff]
        %v1066 = vld [vmem:[%s1050 + $0x78] sm:$0xff]
        %1067 = vmatprep.subr.mxu0 0.0
        %1068 = vmatpush1.msra.mxu0 %v1066
        %1069 = vmatprep.subr.mxu0 0.0
        %1070 = vmatpush1.msra.mxu0 %v1065
        %1071 = vmatprep.subr.mxu0 0.0
        %1072 = vmatpush1.msra.mxu0 %v1064
        %1073 = vmatprep.subr.mxu0 0.0
        %1074 = vmatpush1.msra.mxu0 %v1063
        %1075 = vmatprep.subr.mxu0 0.0
        %1076 = vmatpush1.msra.mxu0 %v1062
        %1077 = vmatprep.subr.mxu0 0.0
        %1078 = vmatpush1.msra.mxu0 %v1061
        %1079 = vmatprep.subr.mxu0 0.0
        %1080 = vmatpush1.msra.mxu0 %v1060
        %1081 = vmatprep.subr.mxu0 0.0
        %1082 = vmatpush1.msra.mxu0 %v1059
        %1083 = vmatprep.subr.mxu0 0.0
        %1084 = vmatpush1.msra.mxu0 %v1058
        %1085 = vmatprep.subr.mxu0 0.0
        %1086 = vmatpush1.msra.mxu0 %v1057
        %1087 = vmatprep.subr.mxu0 0.0
        %1088 = vmatpush1.msra.mxu0 %v1056
        %1089 = vmatprep.subr.mxu0 0.0
        %1090 = vmatpush1.msra.mxu0 %v1055
        %1091 = vmatprep.subr.mxu0 0.0
        %1092 = vmatpush1.msra.mxu0 %v1054
        %1093 = vmatprep.subr.mxu0 0.0
        %1094 = vmatpush1.msra.mxu0 %v1053
        %1095 = vmatprep.subr.mxu0 0.0
        %1096 = vmatpush1.msra.mxu0 %v1052
        %1097 = vmatprep.subr.mxu0 0.0
        %1098 = vmatpush1.msra.mxu0 %v1051
        %1099 = vmatprep.subr.mxu0 0.0
        %1100 = vmatpush2.msra.mxu0 0.0
        %1101 = vmatprep.subr.mxu0 0.0
        %1102 = vmatpush2.msra.mxu0 0.0
        %1103 = vmatprep.subr.mxu0 0.0
        %1104 = vmatpush2.msra.mxu0 0.0
        %1105 = vmatprep.subr.mxu0 0.0
        %1106 = vmatpush2.msra.mxu0 0.0
        %1107 = vmatprep.subr.mxu0 0.0
        %1108 = vmatpush2.msra.mxu0 0.0
        %1109 = vmatprep.subr.mxu0 0.0
        %1110 = vmatpush2.msra.mxu0 0.0
        %1111 = vmatprep.subr.mxu0 0.0
        %1112 = vmatpush2.msra.mxu0 0.0
        %1113 = vmatprep.subr.mxu0 0.0
        %1114 = vmatpush2.msra.mxu0 0.0
        %1115 = vmatprep.subr.mxu0 0.0
        %1116 = vmatpush2.msra.mxu0 0.0
        %1117 = vmatprep.subr.mxu0 0.0
        %1118 = vmatpush2.msra.mxu0 0.0
        %1119 = vmatprep.subr.mxu0 0.0
        %1120 = vmatpush2.msra.mxu0 0.0
        %1121 = vmatprep.subr.mxu0 0.0
        %1122 = vmatpush2.msra.mxu0 0.0
        %1123 = vmatprep.subr.mxu0 0.0
        %1124 = vmatpush2.msra.mxu0 0.0
        %1125 = vmatprep.subr.mxu0 0.0
        %1126 = vmatpush2.msra.mxu0 0.0
        %1127 = vmatprep.subr.mxu0 0.0
        %1128 = vmatpush2.msra.mxu0 0.0
        %1129 = vmatprep.subr.mxu0 0.0
        %1130 = vmatpush2.msra.mxu0 0.0
        %1131 = vmatprep.mubr.f32.mxu0 0.0
        %1132 = vmatmul.mubr.f32.gmra.mxu0 %v865
        %v1133 = vpop.f32.mrf.mxu0
        %v1134 = vadd.f32 0.0, %v1133
        %v1135 = vpop.f32.mrf.mxu0
        %1136 = vmatprep.mubr.f32.mxu0 0.0
        %1137 = vmatmul.mubr.f32.gmra.mxu0 %v866
        %v1138 = vpop.f32.mrf.mxu0
        %v1139 = vadd.f32 0.0, %v1138
        %v1140 = vpop.f32.mrf.mxu0
        %1141 = vdwg.mxu0
        %v1144 = vrot.slane %v950, 7
        %v1145 = vrot.slane %v955, 7
        %v1146 = vsel %vm647, %v1144, %v1145
        %v1149 = vsel %vm647, 0.0, %v1144
        %v1152 = vrot.slane %v1134, 1
        %v1153 = vrot.slane %v1139, 1
        %v1154 = vsel %vm656, %v1152, %v1153
        %v1157 = vsel %vm656, %v1153, 0.0
        %v1158 = vadd.f32 %v1149, %v1042
        %v1159 = vadd.f32 %v1146, %v1047
        %v1160 = vadd.f32 %v1158, %v1154
        %v1161 = vadd.f32 %v1159, %v1157
        %v1162 = vadd.f32 %v1160, %v1161
        %v1163 = vrot.slane %v1162, 4
        %v1164 = vadd.f32 %v1162, %v1163
        %v1165 = vrot.slane %v1164, 2
        %v1166 = vadd.f32 %v1164, %v1165
        %v1167 = vrot.slane %v1166, 1
        %v1168 = vadd.f32 %v1166, %v1167
        %v1169 = vmul.f32 %v1160, %v1160
        %v1170 = vmul.f32 %v1161, %v1161
        %v1171 = vadd.f32 %v1169, %v1170
        %v1172 = vrot.slane %v1171, 4
        %v1173 = vadd.f32 %v1171, %v1172
        %v1174 = vrot.slane %v1173, 2
        %v1175 = vadd.f32 %v1173, %v1174
        %v1176 = vrot.slane %v1175, 1
        %v1177 = vadd.f32 %v1175, %v1176
        %1178 = vmatprep.subr.mxu0 0.0
        %1179 = vmatpush1.msra.mxu0 %v698
        %1180 = vmatprep.subr.mxu0 0.0
        %1181 = vmatpush1.msra.mxu0 %v697
        %1182 = vmatprep.subr.mxu0 0.0
        %1183 = vmatpush1.msra.mxu0 %v696
        %1184 = vmatprep.subr.mxu0 0.0
        %1185 = vmatpush1.msra.mxu0 %v695
        %1186 = vmatprep.subr.mxu0 0.0
        %1187 = vmatpush1.msra.mxu0 %v694
        %1188 = vmatprep.subr.mxu0 0.0
        %1189 = vmatpush1.msra.mxu0 %v693
        %1190 = vmatprep.subr.mxu0 0.0
        %1191 = vmatpush1.msra.mxu0 %v692
        %1192 = vmatprep.subr.mxu0 0.0
        %1193 = vmatpush1.msra.mxu0 %v691
        %1194 = vmatprep.subr.mxu0 0.0
        %1195 = vmatpush1.msra.mxu0 %v690
        %1196 = vmatprep.subr.mxu0 0.0
        %1197 = vmatpush1.msra.mxu0 %v689
        %1198 = vmatprep.subr.mxu0 0.0
        %1199 = vmatpush1.msra.mxu0 %v688
        %1200 = vmatprep.subr.mxu0 0.0
        %1201 = vmatpush1.msra.mxu0 %v687
        %1202 = vmatprep.subr.mxu0 0.0
        %1203 = vmatpush1.msra.mxu0 %v686
        %1204 = vmatprep.subr.mxu0 0.0
        %1205 = vmatpush1.msra.mxu0 %v685
        %1206 = vmatprep.subr.mxu0 0.0
        %1207 = vmatpush1.msra.mxu0 %v684
        %1208 = vmatprep.subr.mxu0 0.0
        %1209 = vmatpush1.msra.mxu0 %v683
        %1210 = vmatprep.subr.mxu0 0.0
        %1211 = vmatpush2.msra.mxu0 0.0
        %1212 = vmatprep.subr.mxu0 0.0
        %1213 = vmatpush2.msra.mxu0 0.0
        %1214 = vmatprep.subr.mxu0 0.0
        %1215 = vmatpush2.msra.mxu0 0.0
        %1216 = vmatprep.subr.mxu0 0.0
        %1217 = vmatpush2.msra.mxu0 0.0
        %1218 = vmatprep.subr.mxu0 0.0
        %1219 = vmatpush2.msra.mxu0 0.0
        %1220 = vmatprep.subr.mxu0 0.0
        %1221 = vmatpush2.msra.mxu0 0.0
        %1222 = vmatprep.subr.mxu0 0.0
        %1223 = vmatpush2.msra.mxu0 0.0
        %1224 = vmatprep.subr.mxu0 0.0
        %1225 = vmatpush2.msra.mxu0 0.0
        %1226 = vmatprep.subr.mxu0 0.0
        %1227 = vmatpush2.msra.mxu0 0.0
        %1228 = vmatprep.subr.mxu0 0.0
        %1229 = vmatpush2.msra.mxu0 0.0
        %1230 = vmatprep.subr.mxu0 0.0
        %1231 = vmatpush2.msra.mxu0 0.0
        %1232 = vmatprep.subr.mxu0 0.0
        %1233 = vmatpush2.msra.mxu0 0.0
        %1234 = vmatprep.subr.mxu0 0.0
        %1235 = vmatpush2.msra.mxu0 0.0
        %1236 = vmatprep.subr.mxu0 0.0
        %1237 = vmatpush2.msra.mxu0 0.0
        %1238 = vmatprep.subr.mxu0 0.0
        %1239 = vmatpush2.msra.mxu0 0.0
        %1240 = vmatprep.subr.mxu0 0.0
        %1241 = vmatpush2.msra.mxu0 0.0
        %1242 = vmatprep.mubr.f32.mxu0 0.0
        %1243 = vmatmul.mubr.f32.gmra.mxu0 %v1168
        %v1244 = vpop.f32.mrf.mxu0
        %v1245 = vadd.f32 0.0, %v1244
        %v1246 = vpop.f32.mrf.mxu0
        %1247 = vdwg.mxu0
        %1248 = vmatprep.subr.mxu0 0.0
        %1249 = vmatpush1.msra.mxu0 %v698
        %1250 = vmatprep.subr.mxu0 0.0
        %1251 = vmatpush1.msra.mxu0 %v697
        %1252 = vmatprep.subr.mxu0 0.0
        %1253 = vmatpush1.msra.mxu0 %v696
        %1254 = vmatprep.subr.mxu0 0.0
        %1255 = vmatpush1.msra.mxu0 %v695
        %1256 = vmatprep.subr.mxu0 0.0
        %1257 = vmatpush1.msra.mxu0 %v694
        %1258 = vmatprep.subr.mxu0 0.0
        %1259 = vmatpush1.msra.mxu0 %v693
        %1260 = vmatprep.subr.mxu0 0.0
        %1261 = vmatpush1.msra.mxu0 %v692
        %1262 = vmatprep.subr.mxu0 0.0
        %1263 = vmatpush1.msra.mxu0 %v691
        %1264 = vmatprep.subr.mxu0 0.0
        %1265 = vmatpush1.msra.mxu0 %v690
        %1266 = vmatprep.subr.mxu0 0.0
        %1267 = vmatpush1.msra.mxu0 %v689
        %1268 = vmatprep.subr.mxu0 0.0
        %1269 = vmatpush1.msra.mxu0 %v688
        %1270 = vmatprep.subr.mxu0 0.0
        %1271 = vmatpush1.msra.mxu0 %v687
        %1272 = vmatprep.subr.mxu0 0.0
        %1273 = vmatpush1.msra.mxu0 %v686
        %1274 = vmatprep.subr.mxu0 0.0
        %1275 = vmatpush1.msra.mxu0 %v685
        %1276 = vmatprep.subr.mxu0 0.0
        %1277 = vmatpush1.msra.mxu0 %v684
        %1278 = vmatprep.subr.mxu0 0.0
        %1279 = vmatpush1.msra.mxu0 %v683
        %1280 = vmatprep.subr.mxu0 0.0
        %1281 = vmatpush2.msra.mxu0 0.0
        %1282 = vmatprep.subr.mxu0 0.0
        %1283 = vmatpush2.msra.mxu0 0.0
        %1284 = vmatprep.subr.mxu0 0.0
        %1285 = vmatpush2.msra.mxu0 0.0
        %1286 = vmatprep.subr.mxu0 0.0
        %1287 = vmatpush2.msra.mxu0 0.0
        %1288 = vmatprep.subr.mxu0 0.0
        %1289 = vmatpush2.msra.mxu0 0.0
        %1290 = vmatprep.subr.mxu0 0.0
        %1291 = vmatpush2.msra.mxu0 0.0
        %1292 = vmatprep.subr.mxu0 0.0
        %1293 = vmatpush2.msra.mxu0 0.0
        %1294 = vmatprep.subr.mxu0 0.0
        %1295 = vmatpush2.msra.mxu0 0.0
        %1296 = vmatprep.subr.mxu0 0.0
        %1297 = vmatpush2.msra.mxu0 0.0
        %1298 = vmatprep.subr.mxu0 0.0
        %1299 = vmatpush2.msra.mxu0 0.0
        %1300 = vmatprep.subr.mxu0 0.0
        %1301 = vmatpush2.msra.mxu0 0.0
        %1302 = vmatprep.subr.mxu0 0.0
        %1303 = vmatpush2.msra.mxu0 0.0
        %1304 = vmatprep.subr.mxu0 0.0
        %1305 = vmatpush2.msra.mxu0 0.0
        %1306 = vmatprep.subr.mxu0 0.0
        %1307 = vmatpush2.msra.mxu0 0.0
        %1308 = vmatprep.subr.mxu0 0.0
        %1309 = vmatpush2.msra.mxu0 0.0
        %1310 = vmatprep.subr.mxu0 0.0
        %1311 = vmatpush2.msra.mxu0 0.0
        %1312 = vmatprep.mubr.f32.mxu0 0.0
        %1313 = vmatmul.mubr.f32.gmra.mxu0 %v1177
        %v1314 = vpop.f32.mrf.mxu0
        %v1315 = vadd.f32 0.0, %v1314
        %v1316 = vpop.f32.mrf.mxu0
        %1317 = vdwg.mxu0
        %v1318 = vmul.f32 %v1245, %v1245
        %v1319 = vsub.f32 %v1315, %v1318
        %v1320 = vmax.f32 %v1319, 0.0
        %v1321 = vadd.f32 %v1320, 1e-05
        %v1322 = vrsqrt.pop %v1321
        %v1323 = vld [vmem:[%s5] sm:$0x1]
        %v1324 = vmul.f32 %v1323, %v1322
        %v1325 = vld [vmem:[%s6] sm:$0x1]
        %v1326 = vmul.f32 %v1245, %v1324
        %v1327 = vsub.f32 %v1325, %v1326
        %v1329 = vlaneseq
        %v1330 = vshrl.u32 %v1329, 7
        %v1331 = vsub.s32 0, %v1330
        %v1332 = vrot.slane %v1324, %v1331
        %v1334 = vmul.f32 %v1160, %v1332
        %v1335 = vmul.f32 %v1161, %v1332
        %v1337 = vlaneseq
        %v1338 = vshrl.u32 %v1337, 7
        %v1339 = vsub.s32 0, %v1338
        %v1340 = vrot.slane %v1327, %v1339
        %v1342 = vadd.f32 %v1334, %v1340
        %v1343 = vadd.f32 %v1335, %v1340
        %v1344 = vadd.f32 %v1342, %v368
        %v1345 = vadd.f32 %v1343, %v369
        %v1346 = vmax.f32 %v1344, 0.0
        %v1347 = vmax.f32 %v1345, 0.0
        %1348 = vst [vmem:[%s367] sm:$0xff] %v1346
        %1349 = vst [vmem:[%s367 + $0x8] sm:$0xff] %v1347
        %s1350 = sand.u32 %s208, 1
        %s1351 = scalar_lea.sflag [#allocation4], %s1350
        %s1352 = sand.u32 %s208, 1
        %s1353 = smul.addr %s1352, 16
        %s1354 = scalar_lea.vmem [#allocation10], %s1353
        // Predicated region
        $region69: #{tpu_custom_call.1} parent=51 // pred_check
          %p1355 = pneg %p218
        $region70: #{tpu_custom_call.1} parent=51 // pred_check_branch
          %1357 = sbr.rel (%p1355) target = $region72
        $region71: #{tpu_custom_call.1} parent=51 // pred_region
          %s1359 = ssub.s32 256, 256
          %1360 = vsyncadd %s1351, %s1359
          %s1361 = smul.addr %s27, 2
          %s1362 = smul.addr %s1361, 128
          %s1363 = scalar_lea.hbm %s8, %s1362
          %s1364 = sshll.u32 %s1354, 4
          %s1365 = int_to_ptr.vmem [resolvable:$true] %s1364
          %1370 = dma.vmem_to_hbm [thread:$0]  %s1365, 256, %s1363, %s1351, 128, 128, 8
        $region72: #{tpu_custom_call.1} parent=51 // pred_fallthru
          _
      $region52: #{tpu_custom_call.1} parent=5 // pred_fallthru
        _
      %p1371 = scmp.le.s32.totalorder 2, %s22
      // Predicated region
      $region73: #{tpu_custom_call.1} parent=5 // pred_check
        %p1372 = pneg %p1371
      $region74: #{tpu_custom_call.1} parent=5 // pred_check_branch
        %1374 = sbr.rel (%p1372) target = $region76
      $region75: #{tpu_custom_call.1} parent=5 // pred_region
        %s1375 = ssub.s32 %s22, 2
        // Predicated region
        $region77: #{tpu_custom_call.1} parent=75 // pred_check
          %p1376 = pneg %p224
        $region78: #{tpu_custom_call.1} parent=75 // pred_check_branch
          %1378 = sbr.rel (%p1376) target = $region80
        $region79: #{tpu_custom_call.1} parent=75 // pred_region
          %s1379 = sand.u32 %s209, 1
          %s1380 = scalar_lea.sflag [#allocation4], %s1379
          %s1381 = sand.u32 %s209, 1
          %s1382 = smul.addr %s1381, 16
          %s1383 = scalar_lea.vmem [#allocation10], %s1382
          %1384 = dma.done %s1380, 256
        $region80: #{tpu_custom_call.1} parent=75 // pred_fallthru
          _
      $region76: #{tpu_custom_call.1} parent=5 // pred_fallthru
        _
    $region6: #{tpu_custom_call.1} parent=1 // loop_footer
      %s26 = sadd.s32 1, %s22
    $region7: #{tpu_custom_call.1} parent=1 // loop_footer_branch
      %21 = sbr.rel target = $region3
    $region8: #{tpu_custom_call.1} parent=1 // loop_exit
      _
    %1385 = vsyncpa [#allocation3], 1
    %s1386 = scalar_lea.sflag [#allocation3], 1
    %1387 = vsyncpa %s1386, 1
    %1388 = vsyncpa [#allocation6], 1
    %1389 = vsyncpa [#allocation9], 1
    %1390 = vsyncpa [#allocation4], 1
    %s1391 = scalar_lea.sflag [#allocation4], 1
    %1392 = vsyncpa %s1391, 1

</llo_original>
